<compile_context>
chip_gen: v6e
topology: v6e:2x2x1
jax: 0.10.0
libtpu: 0.0.40
codegen_flags: <defaults>
</compile_context>

<pallas_src>
import functools

import jax
import jax.numpy as jnp
from jax.experimental import pallas as pl
from jax.experimental.pallas import tpu as pltpu


def _round_up(x, m):
    return ((x + m - 1) // m) * m


def _pinet_kernel(x_ref, w_ref, o_ref, *, degree, in_size, k_pad):
    """One batch tile of the PiNet forward pass (fully fused).

    x_ref : (TB, in_size)      input tile (pipelined)
    w_ref : (k_pad, out_pad)   [W_0^T; W_1^T; ...; W_degree^T], zero-padded
    o_ref : (TB, out_pad)      lane-dense padded output tile
    """
    x = x_ref[...].astype(jnp.float32)            # (TB, in_size)
    tb = x.shape[0]

    # Hoisted column selections of x (reused by every Khatri-Rao level).
    x_cols = [x[:, i:i + 1] for i in range(in_size)]

    # Row-wise Khatri-Rao ladder z_1 .. z_degree:
    #   z_{n+1}[b, i*in^n + j] = x[b, i] * z_n[b, j]
    # Bias handled as a leading ones column (W_0^T is the first weight row).
    parts = [jnp.ones((tb, 1), jnp.float32), x]
    z = x
    for _ in range(2, degree + 1):
        z = jnp.concatenate([x_cols[i] * z for i in range(in_size)], axis=1)
        parts.append(z)
    z_all = jnp.concatenate(parts, axis=1)        # (TB, 1 + sum_n in^n)

    k = z_all.shape[1]
    if k < k_pad:                                 # zero-pad the contraction dim
        z_all = jnp.concatenate(
            [z_all, jnp.zeros((tb, k_pad - k), jnp.float32)], axis=1)

    # Single MXU matmul covering the bias and every degree 1..degree.
    o_ref[...] = jnp.dot(
        z_all, w_ref[...], preferred_element_type=jnp.float32
    ).astype(o_ref.dtype)


def _prep_weights(weights, degree, in_size, out_size, out_pad, k_pad):
    """Stack [W_0^T; W_1^T; ...; W_degree^T], zero-pad to (k_pad, out_pad)."""
    f32 = jnp.float32
    rows = [jnp.asarray(weights[0], f32).T]              # (1, out)
    for n in range(1, degree + 1):
        rows.append(jnp.asarray(weights[n], f32).T)      # (in^n, out)
    w = jnp.concatenate(rows, axis=0)                     # (K, out)
    return jnp.zeros((k_pad, out_pad), f32).at[:w.shape[0], :out_size].set(w)


def _vmem_budget_bytes():
    """Generation-aware VMEM budget (128 MiB v5e/v6e, 64 MiB/TC v7x) - headroom."""
    try:
        cap = int(pltpu.get_tpu_info().vmem_capacity_bytes)
    except Exception:  # conservative fallback (safe on every generation)
        cap = 64 << 20
    return max(16 << 20, int(cap * 0.75))


def _tile_bytes(tb, in_size, k_pad, out_pad):
    """Per-tile VMEM estimate: x/out blocks double-buffered by the pipeline,
    z_all + matmul result live once, resident weights (x2 for safety)."""
    per_tile = 4 * tb * (2 * in_size + 2 * out_pad + 2 * k_pad)
    weights = 4 * 2 * k_pad * out_pad
    return per_tile + weights


def _choose_tb(b, in_size, k_pad, out_pad, budget):
    b8 = _round_up(max(b, 1), 8)
    # Large tile: amortize ~0.35us/step overhead, contiguous multi-10s-of-KiB
    # DMAs, MXU M-dim >= its native height on every generation.
    tb = min(1024, b8)
    # Keep the grid >= 2 for reasonably-sized batches so the "parallel" batch
    # axis can shard across both TensorCores on v7x (one extra grid step is
    # noise on single-TC v5e/v6e).
    if b8 >= 64 and b8 <= tb:
        tb = _round_up((b8 + 1) // 2, 8)
    # Shrink until the working set fits the (generation-aware) VMEM budget.
    while tb > 8 and _tile_bytes(tb, in_size, k_pad, out_pad) > budget:
        tb = _round_up(tb // 2, 8)
    return tb


def pinet_forward(x, weights, *, degree, in_size, out_size, tb=None):
    """x: (B, in_size) float32. weights: [W_0 (out,1), W_1 (out,in), ...,
    W_degree (out, in**degree)].  Returns (B, out_size) float32 (== PyTorch out.T)."""
    assert degree >= 1
    b = x.shape[0]
    out_pad = _round_up(max(out_size, 1), 128)            # lane-dense output slab
    k = 1 + sum(in_size ** n for n in range(1, degree + 1))
    k_pad = _round_up(k, 8)                                # sublane-aligned weight K

    w = _prep_weights(weights, degree, in_size, out_size, out_pad, k_pad)

    budget = _vmem_budget_bytes()
    if tb is None:
        tb = _choose_tb(b, in_size, k_pad, out_pad, budget)
    tb = _round_up(tb, 8)
    b_pad = _round_up(b, tb)

    x_p = jnp.asarray(x, jnp.float32)
    if b_pad != b:
        x_p = jnp.pad(x_p, ((0, b_pad - b), (0, 0)))

    vmem_limit = int(min(budget,
                         max(32 << 20, 2 * _tile_bytes(tb, in_size, k_pad, out_pad))))

    kernel = functools.partial(
        _pinet_kernel, degree=degree, in_size=in_size, k_pad=k_pad)

    out_p = pl.pallas_call(
        kernel,
        out_shape=jax.ShapeDtypeStruct((b_pad, out_pad), jnp.float32),
        grid=(b_pad // tb,),
        in_specs=[
            pl.BlockSpec((tb, in_size), lambda i: (i, 0)),    # pipelined x tile
            pl.BlockSpec((k_pad, out_pad), lambda i: (0, 0)),  # resident weights
        ],
        out_specs=pl.BlockSpec((tb, out_pad), lambda i: (i, 0)),
        compiler_params=pltpu.CompilerParams(
            dimension_semantics=("parallel",),
            vmem_limit_bytes=vmem_limit,
        ),
    )(x_p, w)

    # A fused consumer should take the padded slab directly; the slice here is
    # only for the standalone API.
    return out_p[:b, :out_size]


def pinet_reference(x, weights, *, degree, in_size, out_size):
    """Pure-JAX reference mirroring the PyTorch forward (batch-major, f32)."""
    b = x.shape[0]
    x = jnp.asarray(x, jnp.float32)
    out = jnp.broadcast_to(jnp.asarray(weights[0], jnp.float32).T, (b, out_size))
    z = x
    for n in range(1, degree + 1):
        out = out + z @ jnp.asarray(weights[n], jnp.float32).T
        if n < degree:
            z = (x[:, :, None] * z[:, None, :]).reshape(b, in_size ** (n + 1))
    return out


if __name__ == "__main__":
    degree = 3
    in_size = 4
    out_size = 8
    batch = 500          # not a multiple of the tile -> exercises batch padding

    key = jax.random.PRNGKey(0)
    k_x, k_w = jax.random.split(key)

    # Deterministic synthetic parameters (shapes match PiNet.__init__):
    #   W_0: (out_size, 1) ~ 10 * U[0,1),  W_n: (out_size, in_size**n) ~ 20 * U[0,1)
    weights = []
    kw, sub = jax.random.split(k_w)
    weights.append(10.0 * jax.random.uniform(sub, (out_size, 1), dtype=jnp.float32))
    cols = 1
    for _ in range(1, degree + 1):
        cols *= in_size
        kw, sub = jax.random.split(kw)
        weights.append(
            20.0 * jax.random.uniform(sub, (out_size, cols), dtype=jnp.float32))

    x = jax.random.normal(k_x, (batch, in_size), dtype=jnp.float32)

    out = pinet_forward(
        x, weights, degree=degree, in_size=in_size, out_size=out_size)
    out = jax.block_until_ready(out)

    ref = pinet_reference(
        x, weights, degree=degree, in_size=in_size, out_size=out_size)

    assert out.shape == (batch, out_size)
    # f32 (TPU) vs the module's f64: degree-3 monomials with U(0,20) weights
    # reach ~1e3 magnitude, so compare with a relative tolerance.
    assert jnp.allclose(out, ref, rtol=1e-4, atol=1e-2), "mismatch vs reference"

    print("KERNEL_OK")
</pallas_src>

<mosaic_0001>
module attributes {stable_mosaic.version = 11 : i64} {
  func.func @_pinet_kernel(%arg0: i32, %arg1: memref<256x4xf32, #tpu.memory_space<vmem>>, %arg2: memref<88x128xf32, #tpu.memory_space<vmem>>, %arg3: memref<256x128xf32, #tpu.memory_space<vmem>>) attributes {dimension_semantics = [#tpu.dimension_semantics<parallel>], iteration_bounds = array<i64: 2>, scalar_prefetch = 0 : i64, scratch_operands = 0 : i64, tpu.core_type = #tpu.core_type<tc>, window_params = [{transform_indices = @transform_0, window_bounds = array<i64: 256, 4>}, {pipeline_mode = #tpu.pipeline_mode<synchronous>, transform_indices = @transform_1, window_bounds = array<i64: 88, 128>}, {transform_indices = @transform_2, window_bounds = array<i64: 256, 128>}]} {
    %c0 = arith.constant 0 : index
    %c0_0 = arith.constant 0 : index
    %0 = vector.load %arg1[%c0, %c0_0] : memref<256x4xf32, #tpu.memory_space<vmem>>, vector<256x4xf32>
    %1 = vector.extract_strided_slice %0 {offsets = [0, 0], sizes = [256, 1], strides = [1, 1]} : vector<256x4xf32> to vector<256x1xf32>
    %2 = vector.extract_strided_slice %0 {offsets = [0, 1], sizes = [256, 1], strides = [1, 1]} : vector<256x4xf32> to vector<256x1xf32>
    %3 = vector.extract_strided_slice %0 {offsets = [0, 2], sizes = [256, 1], strides = [1, 1]} : vector<256x4xf32> to vector<256x1xf32>
    %4 = vector.extract_strided_slice %0 {offsets = [0, 3], sizes = [256, 1], strides = [1, 1]} : vector<256x4xf32> to vector<256x1xf32>
    %cst = arith.constant 1.000000e+00 : f32
    %5 = vector.broadcast %cst : f32 to vector<256x1xf32>
    %6 = vector.broadcast %1 : vector<256x1xf32> to vector<256x4xf32>
    %7 = arith.mulf %6, %0 : vector<256x4xf32>
    %8 = vector.broadcast %2 : vector<256x1xf32> to vector<256x4xf32>
    %9 = arith.mulf %8, %0 : vector<256x4xf32>
    %10 = vector.broadcast %3 : vector<256x1xf32> to vector<256x4xf32>
    %11 = arith.mulf %10, %0 : vector<256x4xf32>
    %12 = vector.broadcast %4 : vector<256x1xf32> to vector<256x4xf32>
    %13 = arith.mulf %12, %0 : vector<256x4xf32>
    %14 = tpu.concatenate %7, %9, %11, %13 in 1 : vector<256x4xf32>, vector<256x4xf32>, vector<256x4xf32>, vector<256x4xf32> -> vector<256x16xf32>
    %15 = vector.broadcast %1 : vector<256x1xf32> to vector<256x16xf32>
    %16 = arith.mulf %15, %14 : vector<256x16xf32>
    %17 = vector.broadcast %2 : vector<256x1xf32> to vector<256x16xf32>
    %18 = arith.mulf %17, %14 : vector<256x16xf32>
    %19 = vector.broadcast %3 : vector<256x1xf32> to vector<256x16xf32>
    %20 = arith.mulf %19, %14 : vector<256x16xf32>
    %21 = vector.broadcast %4 : vector<256x1xf32> to vector<256x16xf32>
    %22 = arith.mulf %21, %14 : vector<256x16xf32>
    %23 = tpu.concatenate %16, %18, %20, %22 in 1 : vector<256x16xf32>, vector<256x16xf32>, vector<256x16xf32>, vector<256x16xf32> -> vector<256x64xf32>
    %24 = tpu.concatenate %5, %0, %14, %23 in 1 : vector<256x1xf32>, vector<256x4xf32>, vector<256x16xf32>, vector<256x64xf32> -> vector<256x85xf32>
    %cst_1 = arith.constant 0.000000e+00 : f32
    %25 = vector.broadcast %cst_1 : f32 to vector<256x3xf32>
    %26 = tpu.concatenate %24, %25 in 1 : vector<256x85xf32>, vector<256x3xf32> -> vector<256x88xf32>
    %c0_2 = arith.constant 0 : index
    %c0_3 = arith.constant 0 : index
    %27 = vector.load %arg2[%c0_2, %c0_3] : memref<88x128xf32, #tpu.memory_space<vmem>>, vector<88x128xf32>
    %cst_4 = arith.constant dense<0.000000e+00> : vector<256x128xf32>
    %28 = tpu.matmul %26, %27, %cst_4 {dimension_numbers = #tpu.dot_dimension_numbers<[1], [0], [0], [1], [0, 0, 1, 1], [], []>} : vector<256x88xf32>, vector<88x128xf32>, vector<256x128xf32> -> vector<256x128xf32>
    %c0_5 = arith.constant 0 : index
    %c0_6 = arith.constant 0 : index
    %29 = vector.load %arg3[%c0_5, %c0_6] : memref<256x128xf32, #tpu.memory_space<vmem>>, vector<256x128xf32>
    tpu.vector_store %arg3[%c0_5, %c0_6], %28 {strides = array<i32>} : memref<256x128xf32, #tpu.memory_space<vmem>>, vector<256x128xf32>,
    return
  }
  func.func @transform_0(%arg0: i32) -> (i32, i32) {
    %c0_i32 = arith.constant 0 : i32
    %c0_i32_0 = arith.constant 0 : i32
    return %arg0, %c0_i32 : i32, i32
  }
  func.func @transform_1(%arg0: i32) -> (i32, i32) {
    %c0_i32 = arith.constant 0 : i32
    %c0_i32_0 = arith.constant 0 : i32
    %c0_i32_1 = arith.constant 0 : i32
    return %c0_i32, %c0_i32_0 : i32, i32
  }
  func.func @transform_2(%arg0: i32) -> (i32, i32) {
    %c0_i32 = arith.constant 0 : i32
    %c0_i32_0 = arith.constant 0 : i32
    return %arg0, %c0_i32 : i32, i32
  }
}

</mosaic_0001>

<llo_original>
// kernel: tpu_custom_call.1
$region0: #{tpu_custom_call.1}
  #allocation0 [shape = 'u32[]', space=smem, size = 0x4, offset = 0x4, fixed_abs, tag = 'smem constant byte address 0x4 - core index']
  #allocation1 [shape = 'u32[144,128]{1,0:T(1,128)}', space=vmem, size = 0x12000, scoped, tag = 'internal scratch']
  %s0 = inlined_call_operand.vmem [shape: f32[512,4], index: 0, kind: input, shape index: {}]
  %s1 = inlined_call_operand.vmem [shape: f32[88,128], index: 1, kind: input, shape index: {}]
  %s2 = inlined_call_operand.hbm [shape: f32[512,128], index: 2, kind: output, shape index: {}]
  %s3 = sld [smem:[#allocation0]]
  $region41: #{tpu_custom_call.1} parent=0
    _
  %s5 = ssub.s32 1, %s3
  %s6 = scalar_select 0, %s5, %s3
  $region1: #{tpu_custom_call.1} parent=0
    #allocation2 [shape = 'u8[262144]{0}', space=vmem, size = 0x40000, scoped, tag = 'output window, operand 0']
    #allocation3 [shape = 's32[2]{0}', space=sflag, size = 0x8, scoped, tag = 'scoped memory for tpu_custom_call.1']
    %7 = vsyncpa [#allocation3], 0
    %s8 = scalar_lea.sflag [#allocation3], 1
    %9 = vsyncpa %s8, 0
    loop: start=0, step=1, limit=4
    $region2: #{tpu_custom_call.1} parent=1 // loop_pre_header
      _
    $region3: #{tpu_custom_call.1} parent=1 // loop_header
      %s11 = sphi 0, %s15
      %p12 = scmp.ge.s32.totalorder %s11, 4
      %s21 = sphi 0, %s23
      %s24 = sphi 0, %s21
      %s25 = sphi 0, %s24
      %s41 = sphi 0, %s25
      %s45 = sphi 0, %s45
      %s47 = sphi 0, %s45
      %s48 = sphi 0, %s47
      %s62 = sphi 0, %s48
      %s68 = sphi 0, %s70
      %s71 = sphi 0, %s68
      %s72 = sphi 0, %s71
      %s88 = sphi 0, %s72
    $region4: #{tpu_custom_call.1} parent=1 // loop_header_branch
      %14 = sbr.rel (%p12) target = $region8
    $region5: #{tpu_custom_call.1} parent=1 // loop_body
      %s16 = ssub.s32 %s11, 1
      %s17 = ssub.s32 %s11, 2
      %s18 = sadd.s32 %s11, 1
      %s19 = ssub.s32 %s11, %s18
      %p20 = scmp.eq.s32.totalorder %s19, 0
      %s22 = sadd.s32 %s21, 1
      %s23 = scalar_select %p20, %s21, %s22
      %p26 = pneg %p20
      %p27 = scmp.eq.s32.totalorder %s11, 1
      %p28 = por %p26, %p27
      %p29 = scmp.ne.s32.totalorder %s21, %s24
      %p30 = scmp.eq.s32.totalorder %s11, 0
      %p31 = por %p29, %p30
      %p32 = scmp.ne.s32.totalorder %s21, %s24
      %p33 = scmp.eq.s32.totalorder %s16, 1
      %p34 = por %p32, %p33
      %p35 = scmp.ne.s32.totalorder %s24, %s25
      %p36 = scmp.eq.s32.totalorder %s16, 0
      %p37 = por %p35, %p36
      %p38 = scmp.ne.s32.totalorder %s24, %s25
      %p39 = scmp.eq.s32.totalorder %s17, 1
      %p40 = por %p38, %p39
      %p42 = scmp.ne.s32.totalorder %s25, %s41
      %p43 = scmp.eq.s32.totalorder %s17, 0
      %p44 = por %p42, %p43
      %s46 = sadd.s32 %s45, 1
      %p49 = scmp.eq.s32.totalorder %s11, 1
      %p50 = scmp.ne.s32.totalorder %s45, %s47
      %p51 = scmp.eq.s32.totalorder %s11, 0
      %p52 = por %p50, %p51
      %p53 = scmp.ne.s32.totalorder %s45, %s47
      %p54 = scmp.eq.s32.totalorder %s16, 1
      %p55 = por %p53, %p54
      %p56 = scmp.ne.s32.totalorder %s47, %s48
      %p57 = scmp.eq.s32.totalorder %s16, 0
      %p58 = por %p56, %p57
      %p59 = scmp.ne.s32.totalorder %s47, %s48
      %p60 = scmp.eq.s32.totalorder %s17, 1
      %p61 = por %p59, %p60
      %p63 = scmp.ne.s32.totalorder %s48, %s62
      %p64 = scmp.eq.s32.totalorder %s17, 0
      %p65 = por %p63, %p64
      %s66 = ssub.s32 %s11, %s18
      %p67 = scmp.eq.s32.totalorder %s66, 0
      %s69 = sadd.s32 %s68, 1
      %s70 = scalar_select %p67, %s68, %s69
      %p73 = pneg %p67
      %p74 = scmp.eq.s32.totalorder %s11, 1
      %p75 = por %p73, %p74
      %p76 = scmp.ne.s32.totalorder %s68, %s71
      %p77 = scmp.eq.s32.totalorder %s11, 0
      %p78 = por %p76, %p77
      %p79 = scmp.ne.s32.totalorder %s68, %s71
      %p80 = scmp.eq.s32.totalorder %s16, 1
      %p81 = por %p79, %p80
      %p82 = scmp.ne.s32.totalorder %s71, %s72
      %p83 = scmp.eq.s32.totalorder %s16, 0
      %p84 = por %p82, %p83
      %p85 = scmp.ne.s32.totalorder %s71, %s72
      %p86 = scmp.eq.s32.totalorder %s17, 1
      %p87 = por %p85, %p86
      %p89 = scmp.ne.s32.totalorder %s72, %s88
      %p90 = scmp.eq.s32.totalorder %s17, 0
      %p91 = por %p89, %p90
      %p92 = scmp.le.s32.totalorder 1, %s11
      %p93 = scmp.lt.s32.totalorder %s11, 3
      %p94 = pnand %p92, %p93
      %p95 = pneg %p94
      // Predicated region
      $region9: #{tpu_custom_call.1} parent=5 // pred_check
        _
      $region10: #{tpu_custom_call.1} parent=5 // pred_check_branch
        %97 = sbr.rel (%p94) target = $region12
      $region11: #{tpu_custom_call.1} parent=5 // pred_region
        %s98 = ssub.s32 %s11, 1
        // Predicated region
        $region13: #{tpu_custom_call.1} parent=11 // pred_check
          %p99 = pneg %p58
        $region14: #{tpu_custom_call.1} parent=11 // pred_check_branch
          %101 = sbr.rel (%p99) target = $region16
        $region15: #{tpu_custom_call.1} parent=11 // pred_region
          _
        $region16: #{tpu_custom_call.1} parent=11 // pred_fallthru
          _
      $region12: #{tpu_custom_call.1} parent=5 // pred_fallthru
        _
      %p102 = scmp.lt.s32.totalorder %s11, 2
      // Predicated region
      $region17: #{tpu_custom_call.1} parent=5 // pred_check
        %p103 = pneg %p102
      $region18: #{tpu_custom_call.1} parent=5 // pred_check_branch
        %105 = sbr.rel (%p103) target = $region20
      $region19: #{tpu_custom_call.1} parent=5 // pred_region
        // Predicated region
        $region21: #{tpu_custom_call.1} parent=19 // pred_check
          %p106 = pneg %p31
        $region22: #{tpu_custom_call.1} parent=19 // pred_check_branch
          %108 = sbr.rel (%p106) target = $region24
        $region23: #{tpu_custom_call.1} parent=19 // pred_region
          %s109 = smul.u32 32, %s11
          %p110 = scmp.lt.s32.totalorder %s109, 63
          %s111 = scalar_select %p110, %s109, 63
          %s112 = smul.addr %s111, 8
          %s113 = scalar_lea.vmem %s0, %s112
          %s114 = smul.u32 32, %s11
        $region24: #{tpu_custom_call.1} parent=19 // pred_fallthru
          _
      $region20: #{tpu_custom_call.1} parent=5 // pred_fallthru
        _
      %p115 = scmp.le.s32.totalorder 1, %s11
      %p116 = scmp.lt.s32.totalorder %s11, 3
      %p117 = pnand %p115, %p116
      %p118 = pneg %p117
      // Predicated region
      $region25: #{tpu_custom_call.1} parent=5 // pred_check
        _
      $region26: #{tpu_custom_call.1} parent=5 // pred_check_branch
        %120 = sbr.rel (%p117) target = $region28
      $region27: #{tpu_custom_call.1} parent=5 // pred_region
        %s121 = ssub.s32 %s11, 1
        %s122 = smul.u32 32, %s16
        %p123 = scmp.lt.s32.totalorder %s122, 63
        %s124 = scalar_select %p123, %s122, 63
        %s125 = smul.addr %s124, 8
        %s126 = scalar_lea.vmem %s0, %s125
        %p127 = pneg %p37
        %p128 = pneg %p34
        %p129 = pneg %p58
        %p130 = pneg %p55
        %p131 = pneg %p84
        %p132 = pneg %p81
        %s133 = sand.u32 %s71, 1
        %s134 = scalar_lea.sflag [#allocation3], %s133
        %s135 = sand.u32 %s71, 1
        %s136 = smul.addr %s135, 256
        %s137 = scalar_lea.vmem [#allocation2], %s136
        %s138 = smul.u32 32, %s16
        %p139 = scmp.lt.s32.totalorder %s138, 63
        %s140 = scalar_select %p139, %s138, 63
        %s141 = smul.addr %s140, 8
        %s142 = scalar_lea.vmem %s0, %s141
        %s143 = smul.u32 32, %s16
        %s144 = smul.u32 32, %s16
        %v145 = vld [vmem:[%s142] sm:$0xff]
        %v146 = vld [vmem:[%s142 + $0x8] sm:$0xff]
        %v147 = vld [vmem:[%s142 + $0x10] sm:$0xff]
        %v148 = vld [vmem:[%s142 + $0x18] sm:$0xff]
        %v149 = vld [vmem:[%s142 + $0x20] sm:$0xff]
        %v150 = vld [vmem:[%s142 + $0x28] sm:$0xff]
        %v151 = vld [vmem:[%s142 + $0x30] sm:$0xff]
        %v152 = vld [vmem:[%s142 + $0x38] sm:$0xff]
        %v153 = vld [vmem:[%s142 + $0x40] sm:$0xff]
        %v154 = vld [vmem:[%s142 + $0x48] sm:$0xff]
        %v155 = vld [vmem:[%s142 + $0x50] sm:$0xff]
        %v156 = vld [vmem:[%s142 + $0x58] sm:$0xff]
        %v157 = vld [vmem:[%s142 + $0x60] sm:$0xff]
        %v158 = vld [vmem:[%s142 + $0x68] sm:$0xff]
        %v159 = vld [vmem:[%s142 + $0x70] sm:$0xff]
        %v160 = vld [vmem:[%s142 + $0x78] sm:$0xff]
        %v161 = vld [vmem:[%s142 + $0x80] sm:$0xff]
        %v162 = vld [vmem:[%s142 + $0x88] sm:$0xff]
        %v163 = vld [vmem:[%s142 + $0x90] sm:$0xff]
        %v164 = vld [vmem:[%s142 + $0x98] sm:$0xff]
        %v165 = vld [vmem:[%s142 + $0xa0] sm:$0xff]
        %v166 = vld [vmem:[%s142 + $0xa8] sm:$0xff]
        %v167 = vld [vmem:[%s142 + $0xb0] sm:$0xff]
        %v168 = vld [vmem:[%s142 + $0xb8] sm:$0xff]
        %v169 = vld [vmem:[%s142 + $0xc0] sm:$0xff]
        %v170 = vld [vmem:[%s142 + $0xc8] sm:$0xff]
        %v171 = vld [vmem:[%s142 + $0xd0] sm:$0xff]
        %v172 = vld [vmem:[%s142 + $0xd8] sm:$0xff]
        %v173 = vld [vmem:[%s142 + $0xe0] sm:$0xff]
        %v174 = vld [vmem:[%s142 + $0xe8] sm:$0xff]
        %v175 = vld [vmem:[%s142 + $0xf0] sm:$0xff]
        %v176 = vld [vmem:[%s142 + $0xf8] sm:$0xff]
        %178 = vset.pattern.permute.xlu0 0
        %179 = vperm.xlu0 %178, %v145
        %v180 = vpop.permute.xlu0 %179
        %183 = vset.pattern.permute.xlu0 0
        %184 = vperm.xlu0 %183, %v146
        %v185 = vpop.permute.xlu0 %184
        %188 = vset.pattern.permute.xlu0 0
        %189 = vperm.xlu0 %188, %v147
        %v190 = vpop.permute.xlu0 %189
        %193 = vset.pattern.permute.xlu0 0
        %194 = vperm.xlu0 %193, %v148
        %v195 = vpop.permute.xlu0 %194
        %198 = vset.pattern.permute.xlu0 0
        %199 = vperm.xlu0 %198, %v149
        %v200 = vpop.permute.xlu0 %199
        %203 = vset.pattern.permute.xlu0 0
        %204 = vperm.xlu0 %203, %v150
        %v205 = vpop.permute.xlu0 %204
        %208 = vset.pattern.permute.xlu0 0
        %209 = vperm.xlu0 %208, %v151
        %v210 = vpop.permute.xlu0 %209
        %213 = vset.pattern.permute.xlu0 0
        %214 = vperm.xlu0 %213, %v152
        %v215 = vpop.permute.xlu0 %214
        %218 = vset.pattern.permute.xlu0 0
        %219 = vperm.xlu0 %218, %v153
        %v220 = vpop.permute.xlu0 %219
        %223 = vset.pattern.permute.xlu0 0
        %224 = vperm.xlu0 %223, %v154
        %v225 = vpop.permute.xlu0 %224
        %228 = vset.pattern.permute.xlu0 0
        %229 = vperm.xlu0 %228, %v155
        %v230 = vpop.permute.xlu0 %229
        %233 = vset.pattern.permute.xlu0 0
        %234 = vperm.xlu0 %233, %v156
        %v235 = vpop.permute.xlu0 %234
        %238 = vset.pattern.permute.xlu0 0
        %239 = vperm.xlu0 %238, %v157
        %v240 = vpop.permute.xlu0 %239
        %243 = vset.pattern.permute.xlu0 0
        %244 = vperm.xlu0 %243, %v158
        %v245 = vpop.permute.xlu0 %244
        %248 = vset.pattern.permute.xlu0 0
        %249 = vperm.xlu0 %248, %v159
        %v250 = vpop.permute.xlu0 %249
        %253 = vset.pattern.permute.xlu0 0
        %254 = vperm.xlu0 %253, %v160
        %v255 = vpop.permute.xlu0 %254
        %258 = vset.pattern.permute.xlu0 0
        %259 = vperm.xlu0 %258, %v161
        %v260 = vpop.permute.xlu0 %259
        %263 = vset.pattern.permute.xlu0 0
        %264 = vperm.xlu0 %263, %v162
        %v265 = vpop.permute.xlu0 %264
        %268 = vset.pattern.permute.xlu0 0
        %269 = vperm.xlu0 %268, %v163
        %v270 = vpop.permute.xlu0 %269
        %273 = vset.pattern.permute.xlu0 0
        %274 = vperm.xlu0 %273, %v164
        %v275 = vpop.permute.xlu0 %274
        %278 = vset.pattern.permute.xlu0 0
        %279 = vperm.xlu0 %278, %v165
        %v280 = vpop.permute.xlu0 %279
        %283 = vset.pattern.permute.xlu0 0
        %284 = vperm.xlu0 %283, %v166
        %v285 = vpop.permute.xlu0 %284
        %288 = vset.pattern.permute.xlu0 0
        %289 = vperm.xlu0 %288, %v167
        %v290 = vpop.permute.xlu0 %289
        %293 = vset.pattern.permute.xlu0 0
        %294 = vperm.xlu0 %293, %v168
        %v295 = vpop.permute.xlu0 %294
        %298 = vset.pattern.permute.xlu0 0
        %299 = vperm.xlu0 %298, %v169
        %v300 = vpop.permute.xlu0 %299
        %303 = vset.pattern.permute.xlu0 0
        %304 = vperm.xlu0 %303, %v170
        %v305 = vpop.permute.xlu0 %304
        %308 = vset.pattern.permute.xlu0 0
        %309 = vperm.xlu0 %308, %v171
        %v310 = vpop.permute.xlu0 %309
        %313 = vset.pattern.permute.xlu0 0
        %314 = vperm.xlu0 %313, %v172
        %v315 = vpop.permute.xlu0 %314
        %318 = vset.pattern.permute.xlu0 0
        %319 = vperm.xlu0 %318, %v173
        %v320 = vpop.permute.xlu0 %319
        %323 = vset.pattern.permute.xlu0 0
        %324 = vperm.xlu0 %323, %v174
        %v325 = vpop.permute.xlu0 %324
        %328 = vset.pattern.permute.xlu0 0
        %329 = vperm.xlu0 %328, %v175
        %v330 = vpop.permute.xlu0 %329
        %333 = vset.pattern.permute.xlu0 0
        %334 = vperm.xlu0 %333, %v176
        %v335 = vpop.permute.xlu0 %334
        %v337 = vmul.f32 %v180, %v145
        %v338 = vmul.f32 %v185, %v146
        %v339 = vmul.f32 %v190, %v147
        %v340 = vmul.f32 %v195, %v148
        %v341 = vmul.f32 %v200, %v149
        %v342 = vmul.f32 %v205, %v150
        %v343 = vmul.f32 %v210, %v151
        %v344 = vmul.f32 %v215, %v152
        %v345 = vmul.f32 %v220, %v153
        %v346 = vmul.f32 %v225, %v154
        %v347 = vmul.f32 %v230, %v155
        %v348 = vmul.f32 %v235, %v156
        %v349 = vmul.f32 %v240, %v157
        %v350 = vmul.f32 %v245, %v158
        %v351 = vmul.f32 %v250, %v159
        %v352 = vmul.f32 %v255, %v160
        %v353 = vmul.f32 %v260, %v161
        %v354 = vmul.f32 %v265, %v162
        %v355 = vmul.f32 %v270, %v163
        %v356 = vmul.f32 %v275, %v164
        %v357 = vmul.f32 %v280, %v165
        %v358 = vmul.f32 %v285, %v166
        %v359 = vmul.f32 %v290, %v167
        %v360 = vmul.f32 %v295, %v168
        %v361 = vmul.f32 %v300, %v169
        %v362 = vmul.f32 %v305, %v170
        %v363 = vmul.f32 %v310, %v171
        %v364 = vmul.f32 %v315, %v172
        %v365 = vmul.f32 %v320, %v173
        %v366 = vmul.f32 %v325, %v174
        %v367 = vmul.f32 %v330, %v175
        %v368 = vmul.f32 %v335, %v176
        %369 = vset.pattern.permute.xlu0 1
        %370 = vperm.xlu0 %369, %v145
        %v371 = vpop.permute.xlu0 %370
        %373 = vset.pattern.permute.xlu0 1
        %374 = vperm.xlu0 %373, %v146
        %v375 = vpop.permute.xlu0 %374
        %377 = vset.pattern.permute.xlu0 1
        %378 = vperm.xlu0 %377, %v147
        %v379 = vpop.permute.xlu0 %378
        %381 = vset.pattern.permute.xlu0 1
        %382 = vperm.xlu0 %381, %v148
        %v383 = vpop.permute.xlu0 %382
        %385 = vset.pattern.permute.xlu0 1
        %386 = vperm.xlu0 %385, %v149
        %v387 = vpop.permute.xlu0 %386
        %389 = vset.pattern.permute.xlu0 1
        %390 = vperm.xlu0 %389, %v150
        %v391 = vpop.permute.xlu0 %390
        %393 = vset.pattern.permute.xlu0 1
        %394 = vperm.xlu0 %393, %v151
        %v395 = vpop.permute.xlu0 %394
        %397 = vset.pattern.permute.xlu0 1
        %398 = vperm.xlu0 %397, %v152
        %v399 = vpop.permute.xlu0 %398
        %401 = vset.pattern.permute.xlu0 1
        %402 = vperm.xlu0 %401, %v153
        %v403 = vpop.permute.xlu0 %402
        %405 = vset.pattern.permute.xlu0 1
        %406 = vperm.xlu0 %405, %v154
        %v407 = vpop.permute.xlu0 %406
        %409 = vset.pattern.permute.xlu0 1
        %410 = vperm.xlu0 %409, %v155
        %v411 = vpop.permute.xlu0 %410
        %413 = vset.pattern.permute.xlu0 1
        %414 = vperm.xlu0 %413, %v156
        %v415 = vpop.permute.xlu0 %414
        %417 = vset.pattern.permute.xlu0 1
        %418 = vperm.xlu0 %417, %v157
        %v419 = vpop.permute.xlu0 %418
        %421 = vset.pattern.permute.xlu0 1
        %422 = vperm.xlu0 %421, %v158
        %v423 = vpop.permute.xlu0 %422
        %425 = vset.pattern.permute.xlu0 1
        %426 = vperm.xlu0 %425, %v159
        %v427 = vpop.permute.xlu0 %426
        %429 = vset.pattern.permute.xlu0 1
        %430 = vperm.xlu0 %429, %v160
        %v431 = vpop.permute.xlu0 %430
        %433 = vset.pattern.permute.xlu0 1
        %434 = vperm.xlu0 %433, %v161
        %v435 = vpop.permute.xlu0 %434
        %437 = vset.pattern.permute.xlu0 1
        %438 = vperm.xlu0 %437, %v162
        %v439 = vpop.permute.xlu0 %438
        %441 = vset.pattern.permute.xlu0 1
        %442 = vperm.xlu0 %441, %v163
        %v443 = vpop.permute.xlu0 %442
        %445 = vset.pattern.permute.xlu0 1
        %446 = vperm.xlu0 %445, %v164
        %v447 = vpop.permute.xlu0 %446
        %449 = vset.pattern.permute.xlu0 1
        %450 = vperm.xlu0 %449, %v165
        %v451 = vpop.permute.xlu0 %450
        %453 = vset.pattern.permute.xlu0 1
        %454 = vperm.xlu0 %453, %v166
        %v455 = vpop.permute.xlu0 %454
        %457 = vset.pattern.permute.xlu0 1
        %458 = vperm.xlu0 %457, %v167
        %v459 = vpop.permute.xlu0 %458
        %461 = vset.pattern.permute.xlu0 1
        %462 = vperm.xlu0 %461, %v168
        %v463 = vpop.permute.xlu0 %462
        %465 = vset.pattern.permute.xlu0 1
        %466 = vperm.xlu0 %465, %v169
        %v467 = vpop.permute.xlu0 %466
        %469 = vset.pattern.permute.xlu0 1
        %470 = vperm.xlu0 %469, %v170
        %v471 = vpop.permute.xlu0 %470
        %473 = vset.pattern.permute.xlu0 1
        %474 = vperm.xlu0 %473, %v171
        %v475 = vpop.permute.xlu0 %474
        %477 = vset.pattern.permute.xlu0 1
        %478 = vperm.xlu0 %477, %v172
        %v479 = vpop.permute.xlu0 %478
        %481 = vset.pattern.permute.xlu0 1
        %482 = vperm.xlu0 %481, %v173
        %v483 = vpop.permute.xlu0 %482
        %485 = vset.pattern.permute.xlu0 1
        %486 = vperm.xlu0 %485, %v174
        %v487 = vpop.permute.xlu0 %486
        %489 = vset.pattern.permute.xlu0 1
        %490 = vperm.xlu0 %489, %v175
        %v491 = vpop.permute.xlu0 %490
        %493 = vset.pattern.permute.xlu0 1
        %494 = vperm.xlu0 %493, %v176
        %v495 = vpop.permute.xlu0 %494
        %v497 = vmul.f32 %v371, %v145
        %v498 = vmul.f32 %v375, %v146
        %v499 = vmul.f32 %v379, %v147
        %v500 = vmul.f32 %v383, %v148
        %v501 = vmul.f32 %v387, %v149
        %v502 = vmul.f32 %v391, %v150
        %v503 = vmul.f32 %v395, %v151
        %v504 = vmul.f32 %v399, %v152
        %v505 = vmul.f32 %v403, %v153
        %v506 = vmul.f32 %v407, %v154
        %v507 = vmul.f32 %v411, %v155
        %v508 = vmul.f32 %v415, %v156
        %v509 = vmul.f32 %v419, %v157
        %v510 = vmul.f32 %v423, %v158
        %v511 = vmul.f32 %v427, %v159
        %v512 = vmul.f32 %v431, %v160
        %v513 = vmul.f32 %v435, %v161
        %v514 = vmul.f32 %v439, %v162
        %v515 = vmul.f32 %v443, %v163
        %v516 = vmul.f32 %v447, %v164
        %v517 = vmul.f32 %v451, %v165
        %v518 = vmul.f32 %v455, %v166
        %v519 = vmul.f32 %v459, %v167
        %v520 = vmul.f32 %v463, %v168
        %v521 = vmul.f32 %v467, %v169
        %v522 = vmul.f32 %v471, %v170
        %v523 = vmul.f32 %v475, %v171
        %v524 = vmul.f32 %v479, %v172
        %v525 = vmul.f32 %v483, %v173
        %v526 = vmul.f32 %v487, %v174
        %v527 = vmul.f32 %v491, %v175
        %v528 = vmul.f32 %v495, %v176
        %529 = vset.pattern.permute.xlu0 2
        %530 = vperm.xlu0 %529, %v145
        %v531 = vpop.permute.xlu0 %530
        %533 = vset.pattern.permute.xlu0 2
        %534 = vperm.xlu0 %533, %v146
        %v535 = vpop.permute.xlu0 %534
        %537 = vset.pattern.permute.xlu0 2
        %538 = vperm.xlu0 %537, %v147
        %v539 = vpop.permute.xlu0 %538
        %541 = vset.pattern.permute.xlu0 2
        %542 = vperm.xlu0 %541, %v148
        %v543 = vpop.permute.xlu0 %542
        %545 = vset.pattern.permute.xlu0 2
        %546 = vperm.xlu0 %545, %v149
        %v547 = vpop.permute.xlu0 %546
        %549 = vset.pattern.permute.xlu0 2
        %550 = vperm.xlu0 %549, %v150
        %v551 = vpop.permute.xlu0 %550
        %553 = vset.pattern.permute.xlu0 2
        %554 = vperm.xlu0 %553, %v151
        %v555 = vpop.permute.xlu0 %554
        %557 = vset.pattern.permute.xlu0 2
        %558 = vperm.xlu0 %557, %v152
        %v559 = vpop.permute.xlu0 %558
        %561 = vset.pattern.permute.xlu0 2
        %562 = vperm.xlu0 %561, %v153
        %v563 = vpop.permute.xlu0 %562
        %565 = vset.pattern.permute.xlu0 2
        %566 = vperm.xlu0 %565, %v154
        %v567 = vpop.permute.xlu0 %566
        %569 = vset.pattern.permute.xlu0 2
        %570 = vperm.xlu0 %569, %v155
        %v571 = vpop.permute.xlu0 %570
        %573 = vset.pattern.permute.xlu0 2
        %574 = vperm.xlu0 %573, %v156
        %v575 = vpop.permute.xlu0 %574
        %577 = vset.pattern.permute.xlu0 2
        %578 = vperm.xlu0 %577, %v157
        %v579 = vpop.permute.xlu0 %578
        %581 = vset.pattern.permute.xlu0 2
        %582 = vperm.xlu0 %581, %v158
        %v583 = vpop.permute.xlu0 %582
        %585 = vset.pattern.permute.xlu0 2
        %586 = vperm.xlu0 %585, %v159
        %v587 = vpop.permute.xlu0 %586
        %589 = vset.pattern.permute.xlu0 2
        %590 = vperm.xlu0 %589, %v160
        %v591 = vpop.permute.xlu0 %590
        %593 = vset.pattern.permute.xlu0 2
        %594 = vperm.xlu0 %593, %v161
        %v595 = vpop.permute.xlu0 %594
        %597 = vset.pattern.permute.xlu0 2
        %598 = vperm.xlu0 %597, %v162
        %v599 = vpop.permute.xlu0 %598
        %601 = vset.pattern.permute.xlu0 2
        %602 = vperm.xlu0 %601, %v163
        %v603 = vpop.permute.xlu0 %602
        %605 = vset.pattern.permute.xlu0 2
        %606 = vperm.xlu0 %605, %v164
        %v607 = vpop.permute.xlu0 %606
        %609 = vset.pattern.permute.xlu0 2
        %610 = vperm.xlu0 %609, %v165
        %v611 = vpop.permute.xlu0 %610
        %613 = vset.pattern.permute.xlu0 2
        %614 = vperm.xlu0 %613, %v166
        %v615 = vpop.permute.xlu0 %614
        %617 = vset.pattern.permute.xlu0 2
        %618 = vperm.xlu0 %617, %v167
        %v619 = vpop.permute.xlu0 %618
        %621 = vset.pattern.permute.xlu0 2
        %622 = vperm.xlu0 %621, %v168
        %v623 = vpop.permute.xlu0 %622
        %625 = vset.pattern.permute.xlu0 2
        %626 = vperm.xlu0 %625, %v169
        %v627 = vpop.permute.xlu0 %626
        %629 = vset.pattern.permute.xlu0 2
        %630 = vperm.xlu0 %629, %v170
        %v631 = vpop.permute.xlu0 %630
        %633 = vset.pattern.permute.xlu0 2
        %634 = vperm.xlu0 %633, %v171
        %v635 = vpop.permute.xlu0 %634
        %637 = vset.pattern.permute.xlu0 2
        %638 = vperm.xlu0 %637, %v172
        %v639 = vpop.permute.xlu0 %638
        %641 = vset.pattern.permute.xlu0 2
        %642 = vperm.xlu0 %641, %v173
        %v643 = vpop.permute.xlu0 %642
        %645 = vset.pattern.permute.xlu0 2
        %646 = vperm.xlu0 %645, %v174
        %v647 = vpop.permute.xlu0 %646
        %649 = vset.pattern.permute.xlu0 2
        %650 = vperm.xlu0 %649, %v175
        %v651 = vpop.permute.xlu0 %650
        %653 = vset.pattern.permute.xlu0 2
        %654 = vperm.xlu0 %653, %v176
        %v655 = vpop.permute.xlu0 %654
        %v657 = vmul.f32 %v531, %v145
        %v658 = vmul.f32 %v535, %v146
        %v659 = vmul.f32 %v539, %v147
        %v660 = vmul.f32 %v543, %v148
        %v661 = vmul.f32 %v547, %v149
        %v662 = vmul.f32 %v551, %v150
        %v663 = vmul.f32 %v555, %v151
        %v664 = vmul.f32 %v559, %v152
        %v665 = vmul.f32 %v563, %v153
        %v666 = vmul.f32 %v567, %v154
        %v667 = vmul.f32 %v571, %v155
        %v668 = vmul.f32 %v575, %v156
        %v669 = vmul.f32 %v579, %v157
        %v670 = vmul.f32 %v583, %v158
        %v671 = vmul.f32 %v587, %v159
        %v672 = vmul.f32 %v591, %v160
        %v673 = vmul.f32 %v595, %v161
        %v674 = vmul.f32 %v599, %v162
        %v675 = vmul.f32 %v603, %v163
        %v676 = vmul.f32 %v607, %v164
        %v677 = vmul.f32 %v611, %v165
        %v678 = vmul.f32 %v615, %v166
        %v679 = vmul.f32 %v619, %v167
        %v680 = vmul.f32 %v623, %v168
        %v681 = vmul.f32 %v627, %v169
        %v682 = vmul.f32 %v631, %v170
        %v683 = vmul.f32 %v635, %v171
        %v684 = vmul.f32 %v639, %v172
        %v685 = vmul.f32 %v643, %v173
        %v686 = vmul.f32 %v647, %v174
        %v687 = vmul.f32 %v651, %v175
        %v688 = vmul.f32 %v655, %v176
        %689 = vset.pattern.permute.xlu0 3
        %690 = vperm.xlu0 %689, %v145
        %v691 = vpop.permute.xlu0 %690
        %693 = vset.pattern.permute.xlu0 3
        %694 = vperm.xlu0 %693, %v146
        %v695 = vpop.permute.xlu0 %694
        %697 = vset.pattern.permute.xlu0 3
        %698 = vperm.xlu0 %697, %v147
        %v699 = vpop.permute.xlu0 %698
        %701 = vset.pattern.permute.xlu0 3
        %702 = vperm.xlu0 %701, %v148
        %v703 = vpop.permute.xlu0 %702
        %705 = vset.pattern.permute.xlu0 3
        %706 = vperm.xlu0 %705, %v149
        %v707 = vpop.permute.xlu0 %706
        %709 = vset.pattern.permute.xlu0 3
        %710 = vperm.xlu0 %709, %v150
        %v711 = vpop.permute.xlu0 %710
        %713 = vset.pattern.permute.xlu0 3
        %714 = vperm.xlu0 %713, %v151
        %v715 = vpop.permute.xlu0 %714
        %717 = vset.pattern.permute.xlu0 3
        %718 = vperm.xlu0 %717, %v152
        %v719 = vpop.permute.xlu0 %718
        %721 = vset.pattern.permute.xlu0 3
        %722 = vperm.xlu0 %721, %v153
        %v723 = vpop.permute.xlu0 %722
        %725 = vset.pattern.permute.xlu0 3
        %726 = vperm.xlu0 %725, %v154
        %v727 = vpop.permute.xlu0 %726
        %729 = vset.pattern.permute.xlu0 3
        %730 = vperm.xlu0 %729, %v155
        %v731 = vpop.permute.xlu0 %730
        %733 = vset.pattern.permute.xlu0 3
        %734 = vperm.xlu0 %733, %v156
        %v735 = vpop.permute.xlu0 %734
        %737 = vset.pattern.permute.xlu0 3
        %738 = vperm.xlu0 %737, %v157
        %v739 = vpop.permute.xlu0 %738
        %741 = vset.pattern.permute.xlu0 3
        %742 = vperm.xlu0 %741, %v158
        %v743 = vpop.permute.xlu0 %742
        %745 = vset.pattern.permute.xlu0 3
        %746 = vperm.xlu0 %745, %v159
        %v747 = vpop.permute.xlu0 %746
        %749 = vset.pattern.permute.xlu0 3
        %750 = vperm.xlu0 %749, %v160
        %v751 = vpop.permute.xlu0 %750
        %753 = vset.pattern.permute.xlu0 3
        %754 = vperm.xlu0 %753, %v161
        %v755 = vpop.permute.xlu0 %754
        %757 = vset.pattern.permute.xlu0 3
        %758 = vperm.xlu0 %757, %v162
        %v759 = vpop.permute.xlu0 %758
        %761 = vset.pattern.permute.xlu0 3
        %762 = vperm.xlu0 %761, %v163
        %v763 = vpop.permute.xlu0 %762
        %765 = vset.pattern.permute.xlu0 3
        %766 = vperm.xlu0 %765, %v164
        %v767 = vpop.permute.xlu0 %766
        %769 = vset.pattern.permute.xlu0 3
        %770 = vperm.xlu0 %769, %v165
        %v771 = vpop.permute.xlu0 %770
        %773 = vset.pattern.permute.xlu0 3
        %774 = vperm.xlu0 %773, %v166
        %v775 = vpop.permute.xlu0 %774
        %777 = vset.pattern.permute.xlu0 3
        %778 = vperm.xlu0 %777, %v167
        %v779 = vpop.permute.xlu0 %778
        %781 = vset.pattern.permute.xlu0 3
        %782 = vperm.xlu0 %781, %v168
        %v783 = vpop.permute.xlu0 %782
        %785 = vset.pattern.permute.xlu0 3
        %786 = vperm.xlu0 %785, %v169
        %v787 = vpop.permute.xlu0 %786
        %789 = vset.pattern.permute.xlu0 3
        %790 = vperm.xlu0 %789, %v170
        %v791 = vpop.permute.xlu0 %790
        %793 = vset.pattern.permute.xlu0 3
        %794 = vperm.xlu0 %793, %v171
        %v795 = vpop.permute.xlu0 %794
        %797 = vset.pattern.permute.xlu0 3
        %798 = vperm.xlu0 %797, %v172
        %v799 = vpop.permute.xlu0 %798
        %801 = vset.pattern.permute.xlu0 3
        %802 = vperm.xlu0 %801, %v173
        %v803 = vpop.permute.xlu0 %802
        %805 = vset.pattern.permute.xlu0 3
        %806 = vperm.xlu0 %805, %v174
        %v807 = vpop.permute.xlu0 %806
        %809 = vset.pattern.permute.xlu0 3
        %810 = vperm.xlu0 %809, %v175
        %v811 = vpop.permute.xlu0 %810
        %813 = vset.pattern.permute.xlu0 3
        %814 = vperm.xlu0 %813, %v176
        %v815 = vpop.permute.xlu0 %814
        %v817 = vmul.f32 %v691, %v145
        %v818 = vmul.f32 %v695, %v146
        %v819 = vmul.f32 %v699, %v147
        %v820 = vmul.f32 %v703, %v148
        %v821 = vmul.f32 %v707, %v149
        %v822 = vmul.f32 %v711, %v150
        %v823 = vmul.f32 %v715, %v151
        %v824 = vmul.f32 %v719, %v152
        %v825 = vmul.f32 %v723, %v153
        %v826 = vmul.f32 %v727, %v154
        %v827 = vmul.f32 %v731, %v155
        %v828 = vmul.f32 %v735, %v156
        %v829 = vmul.f32 %v739, %v157
        %v830 = vmul.f32 %v743, %v158
        %v831 = vmul.f32 %v747, %v159
        %v832 = vmul.f32 %v751, %v160
        %v833 = vmul.f32 %v755, %v161
        %v834 = vmul.f32 %v759, %v162
        %v835 = vmul.f32 %v763, %v163
        %v836 = vmul.f32 %v767, %v164
        %v837 = vmul.f32 %v771, %v165
        %v838 = vmul.f32 %v775, %v166
        %v839 = vmul.f32 %v779, %v167
        %v840 = vmul.f32 %v783, %v168
        %v841 = vmul.f32 %v787, %v169
        %v842 = vmul.f32 %v791, %v170
        %v843 = vmul.f32 %v795, %v171
        %v844 = vmul.f32 %v799, %v172
        %v845 = vmul.f32 %v803, %v173
        %v846 = vmul.f32 %v807, %v174
        %v847 = vmul.f32 %v811, %v175
        %v848 = vmul.f32 %v815, %v176
        %881 = vrot.lane.b32.xlu0 %v497, 4
        %v882 = vpop.permute.xlu0 %881
        %883 = vrot.lane.b32.xlu0 %v498, 4
        %v884 = vpop.permute.xlu0 %883
        %885 = vrot.lane.b32.xlu0 %v499, 4
        %v886 = vpop.permute.xlu0 %885
        %887 = vrot.lane.b32.xlu0 %v500, 4
        %v888 = vpop.permute.xlu0 %887
        %889 = vrot.lane.b32.xlu0 %v501, 4
        %v890 = vpop.permute.xlu0 %889
        %891 = vrot.lane.b32.xlu0 %v502, 4
        %v892 = vpop.permute.xlu0 %891
        %893 = vrot.lane.b32.xlu0 %v503, 4
        %v894 = vpop.permute.xlu0 %893
        %895 = vrot.lane.b32.xlu0 %v504, 4
        %v896 = vpop.permute.xlu0 %895
        %897 = vrot.lane.b32.xlu0 %v505, 4
        %v898 = vpop.permute.xlu0 %897
        %899 = vrot.lane.b32.xlu0 %v506, 4
        %v900 = vpop.permute.xlu0 %899
        %901 = vrot.lane.b32.xlu0 %v507, 4
        %v902 = vpop.permute.xlu0 %901
        %903 = vrot.lane.b32.xlu0 %v508, 4
        %v904 = vpop.permute.xlu0 %903
        %905 = vrot.lane.b32.xlu0 %v509, 4
        %v906 = vpop.permute.xlu0 %905
        %907 = vrot.lane.b32.xlu0 %v510, 4
        %v908 = vpop.permute.xlu0 %907
        %909 = vrot.lane.b32.xlu0 %v511, 4
        %v910 = vpop.permute.xlu0 %909
        %911 = vrot.lane.b32.xlu0 %v512, 4
        %v912 = vpop.permute.xlu0 %911
        %913 = vrot.lane.b32.xlu0 %v513, 4
        %v914 = vpop.permute.xlu0 %913
        %915 = vrot.lane.b32.xlu0 %v514, 4
        %v916 = vpop.permute.xlu0 %915
        %917 = vrot.lane.b32.xlu0 %v515, 4
        %v918 = vpop.permute.xlu0 %917
        %919 = vrot.lane.b32.xlu0 %v516, 4
        %v920 = vpop.permute.xlu0 %919
        %921 = vrot.lane.b32.xlu0 %v517, 4
        %v922 = vpop.permute.xlu0 %921
        %923 = vrot.lane.b32.xlu0 %v518, 4
        %v924 = vpop.permute.xlu0 %923
        %925 = vrot.lane.b32.xlu0 %v519, 4
        %v926 = vpop.permute.xlu0 %925
        %927 = vrot.lane.b32.xlu0 %v520, 4
        %v928 = vpop.permute.xlu0 %927
        %929 = vrot.lane.b32.xlu0 %v521, 4
        %v930 = vpop.permute.xlu0 %929
        %931 = vrot.lane.b32.xlu0 %v522, 4
        %v932 = vpop.permute.xlu0 %931
        %933 = vrot.lane.b32.xlu0 %v523, 4
        %v934 = vpop.permute.xlu0 %933
        %935 = vrot.lane.b32.xlu0 %v524, 4
        %v936 = vpop.permute.xlu0 %935
        %937 = vrot.lane.b32.xlu0 %v525, 4
        %v938 = vpop.permute.xlu0 %937
        %939 = vrot.lane.b32.xlu0 %v526, 4
        %v940 = vpop.permute.xlu0 %939
        %941 = vrot.lane.b32.xlu0 %v527, 4
        %v942 = vpop.permute.xlu0 %941
        %943 = vrot.lane.b32.xlu0 %v528, 4
        %v944 = vpop.permute.xlu0 %943
        %1009 = vrot.lane.b32.xlu0 %v657, 8
        %v1010 = vpop.permute.xlu0 %1009
        %1011 = vrot.lane.b32.xlu0 %v658, 8
        %v1012 = vpop.permute.xlu0 %1011
        %1013 = vrot.lane.b32.xlu0 %v659, 8
        %v1014 = vpop.permute.xlu0 %1013
        %1015 = vrot.lane.b32.xlu0 %v660, 8
        %v1016 = vpop.permute.xlu0 %1015
        %1017 = vrot.lane.b32.xlu0 %v661, 8
        %v1018 = vpop.permute.xlu0 %1017
        %1019 = vrot.lane.b32.xlu0 %v662, 8
        %v1020 = vpop.permute.xlu0 %1019
        %1021 = vrot.lane.b32.xlu0 %v663, 8
        %v1022 = vpop.permute.xlu0 %1021
        %1023 = vrot.lane.b32.xlu0 %v664, 8
        %v1024 = vpop.permute.xlu0 %1023
        %1025 = vrot.lane.b32.xlu0 %v665, 8
        %v1026 = vpop.permute.xlu0 %1025
        %1027 = vrot.lane.b32.xlu0 %v666, 8
        %v1028 = vpop.permute.xlu0 %1027
        %1029 = vrot.lane.b32.xlu0 %v667, 8
        %v1030 = vpop.permute.xlu0 %1029
        %1031 = vrot.lane.b32.xlu0 %v668, 8
        %v1032 = vpop.permute.xlu0 %1031
        %1033 = vrot.lane.b32.xlu0 %v669, 8
        %v1034 = vpop.permute.xlu0 %1033
        %1035 = vrot.lane.b32.xlu0 %v670, 8
        %v1036 = vpop.permute.xlu0 %1035
        %1037 = vrot.lane.b32.xlu0 %v671, 8
        %v1038 = vpop.permute.xlu0 %1037
        %1039 = vrot.lane.b32.xlu0 %v672, 8
        %v1040 = vpop.permute.xlu0 %1039
        %1041 = vrot.lane.b32.xlu0 %v673, 8
        %v1042 = vpop.permute.xlu0 %1041
        %1043 = vrot.lane.b32.xlu0 %v674, 8
        %v1044 = vpop.permute.xlu0 %1043
        %1045 = vrot.lane.b32.xlu0 %v675, 8
        %v1046 = vpop.permute.xlu0 %1045
        %1047 = vrot.lane.b32.xlu0 %v676, 8
        %v1048 = vpop.permute.xlu0 %1047
        %1049 = vrot.lane.b32.xlu0 %v677, 8
        %v1050 = vpop.permute.xlu0 %1049
        %1051 = vrot.lane.b32.xlu0 %v678, 8
        %v1052 = vpop.permute.xlu0 %1051
        %1053 = vrot.lane.b32.xlu0 %v679, 8
        %v1054 = vpop.permute.xlu0 %1053
        %1055 = vrot.lane.b32.xlu0 %v680, 8
        %v1056 = vpop.permute.xlu0 %1055
        %1057 = vrot.lane.b32.xlu0 %v681, 8
        %v1058 = vpop.permute.xlu0 %1057
        %1059 = vrot.lane.b32.xlu0 %v682, 8
        %v1060 = vpop.permute.xlu0 %1059
        %1061 = vrot.lane.b32.xlu0 %v683, 8
        %v1062 = vpop.permute.xlu0 %1061
        %1063 = vrot.lane.b32.xlu0 %v684, 8
        %v1064 = vpop.permute.xlu0 %1063
        %1065 = vrot.lane.b32.xlu0 %v685, 8
        %v1066 = vpop.permute.xlu0 %1065
        %1067 = vrot.lane.b32.xlu0 %v686, 8
        %v1068 = vpop.permute.xlu0 %1067
        %1069 = vrot.lane.b32.xlu0 %v687, 8
        %v1070 = vpop.permute.xlu0 %1069
        %1071 = vrot.lane.b32.xlu0 %v688, 8
        %v1072 = vpop.permute.xlu0 %1071
        %1137 = vrot.lane.b32.xlu0 %v817, 12
        %v1138 = vpop.permute.xlu0 %1137
        %1139 = vrot.lane.b32.xlu0 %v818, 12
        %v1140 = vpop.permute.xlu0 %1139
        %1141 = vrot.lane.b32.xlu0 %v819, 12
        %v1142 = vpop.permute.xlu0 %1141
        %1143 = vrot.lane.b32.xlu0 %v820, 12
        %v1144 = vpop.permute.xlu0 %1143
        %1145 = vrot.lane.b32.xlu0 %v821, 12
        %v1146 = vpop.permute.xlu0 %1145
        %1147 = vrot.lane.b32.xlu0 %v822, 12
        %v1148 = vpop.permute.xlu0 %1147
        %1149 = vrot.lane.b32.xlu0 %v823, 12
        %v1150 = vpop.permute.xlu0 %1149
        %1151 = vrot.lane.b32.xlu0 %v824, 12
        %v1152 = vpop.permute.xlu0 %1151
        %1153 = vrot.lane.b32.xlu0 %v825, 12
        %v1154 = vpop.permute.xlu0 %1153
        %1155 = vrot.lane.b32.xlu0 %v826, 12
        %v1156 = vpop.permute.xlu0 %1155
        %1157 = vrot.lane.b32.xlu0 %v827, 12
        %v1158 = vpop.permute.xlu0 %1157
        %1159 = vrot.lane.b32.xlu0 %v828, 12
        %v1160 = vpop.permute.xlu0 %1159
        %1161 = vrot.lane.b32.xlu0 %v829, 12
        %v1162 = vpop.permute.xlu0 %1161
        %1163 = vrot.lane.b32.xlu0 %v830, 12
        %v1164 = vpop.permute.xlu0 %1163
        %1165 = vrot.lane.b32.xlu0 %v831, 12
        %v1166 = vpop.permute.xlu0 %1165
        %1167 = vrot.lane.b32.xlu0 %v832, 12
        %v1168 = vpop.permute.xlu0 %1167
        %1169 = vrot.lane.b32.xlu0 %v833, 12
        %v1170 = vpop.permute.xlu0 %1169
        %1171 = vrot.lane.b32.xlu0 %v834, 12
        %v1172 = vpop.permute.xlu0 %1171
        %1173 = vrot.lane.b32.xlu0 %v835, 12
        %v1174 = vpop.permute.xlu0 %1173
        %1175 = vrot.lane.b32.xlu0 %v836, 12
        %v1176 = vpop.permute.xlu0 %1175
        %1177 = vrot.lane.b32.xlu0 %v837, 12
        %v1178 = vpop.permute.xlu0 %1177
        %1179 = vrot.lane.b32.xlu0 %v838, 12
        %v1180 = vpop.permute.xlu0 %1179
        %1181 = vrot.lane.b32.xlu0 %v839, 12
        %v1182 = vpop.permute.xlu0 %1181
        %1183 = vrot.lane.b32.xlu0 %v840, 12
        %v1184 = vpop.permute.xlu0 %1183
        %1185 = vrot.lane.b32.xlu0 %v841, 12
        %v1186 = vpop.permute.xlu0 %1185
        %1187 = vrot.lane.b32.xlu0 %v842, 12
        %v1188 = vpop.permute.xlu0 %1187
        %1189 = vrot.lane.b32.xlu0 %v843, 12
        %v1190 = vpop.permute.xlu0 %1189
        %1191 = vrot.lane.b32.xlu0 %v844, 12
        %v1192 = vpop.permute.xlu0 %1191
        %1193 = vrot.lane.b32.xlu0 %v845, 12
        %v1194 = vpop.permute.xlu0 %1193
        %1195 = vrot.lane.b32.xlu0 %v846, 12
        %v1196 = vpop.permute.xlu0 %1195
        %1197 = vrot.lane.b32.xlu0 %v847, 12
        %v1198 = vpop.permute.xlu0 %1197
        %1199 = vrot.lane.b32.xlu0 %v848, 12
        %v1200 = vpop.permute.xlu0 %1199
        %vm1233 = vcmask 31744
        %v1234 = vsel %vm1233, %v337, %v882
        %v1235 = vsel %vm1233, %v338, %v884
        %v1236 = vsel %vm1233, %v339, %v886
        %v1237 = vsel %vm1233, %v340, %v888
        %v1238 = vsel %vm1233, %v341, %v890
        %v1239 = vsel %vm1233, %v342, %v892
        %v1240 = vsel %vm1233, %v343, %v894
        %v1241 = vsel %vm1233, %v344, %v896
        %v1242 = vsel %vm1233, %v345, %v898
        %v1243 = vsel %vm1233, %v346, %v900
        %v1244 = vsel %vm1233, %v347, %v902
        %v1245 = vsel %vm1233, %v348, %v904
        %v1246 = vsel %vm1233, %v349, %v906
        %v1247 = vsel %vm1233, %v350, %v908
        %v1248 = vsel %vm1233, %v351, %v910
        %v1249 = vsel %vm1233, %v352, %v912
        %v1250 = vsel %vm1233, %v353, %v914
        %v1251 = vsel %vm1233, %v354, %v916
        %v1252 = vsel %vm1233, %v355, %v918
        %v1253 = vsel %vm1233, %v356, %v920
        %v1254 = vsel %vm1233, %v357, %v922
        %v1255 = vsel %vm1233, %v358, %v924
        %v1256 = vsel %vm1233, %v359, %v926
        %v1257 = vsel %vm1233, %v360, %v928
        %v1258 = vsel %vm1233, %v361, %v930
        %v1259 = vsel %vm1233, %v362, %v932
        %v1260 = vsel %vm1233, %v363, %v934
        %v1261 = vsel %vm1233, %v364, %v936
        %v1262 = vsel %vm1233, %v365, %v938
        %v1263 = vsel %vm1233, %v366, %v940
        %v1264 = vsel %vm1233, %v367, %v942
        %v1265 = vsel %vm1233, %v368, %v944
        %vm1266 = vcmask 64512
        %v1267 = vsel %vm1266, %v1234, %v1010
        %v1268 = vsel %vm1266, %v1235, %v1012
        %v1269 = vsel %vm1266, %v1236, %v1014
        %v1270 = vsel %vm1266, %v1237, %v1016
        %v1271 = vsel %vm1266, %v1238, %v1018
        %v1272 = vsel %vm1266, %v1239, %v1020
        %v1273 = vsel %vm1266, %v1240, %v1022
        %v1274 = vsel %vm1266, %v1241, %v1024
        %v1275 = vsel %vm1266, %v1242, %v1026
        %v1276 = vsel %vm1266, %v1243, %v1028
        %v1277 = vsel %vm1266, %v1244, %v1030
        %v1278 = vsel %vm1266, %v1245, %v1032
        %v1279 = vsel %vm1266, %v1246, %v1034
        %v1280 = vsel %vm1266, %v1247, %v1036
        %v1281 = vsel %vm1266, %v1248, %v1038
        %v1282 = vsel %vm1266, %v1249, %v1040
        %v1283 = vsel %vm1266, %v1250, %v1042
        %v1284 = vsel %vm1266, %v1251, %v1044
        %v1285 = vsel %vm1266, %v1252, %v1046
        %v1286 = vsel %vm1266, %v1253, %v1048
        %v1287 = vsel %vm1266, %v1254, %v1050
        %v1288 = vsel %vm1266, %v1255, %v1052
        %v1289 = vsel %vm1266, %v1256, %v1054
        %v1290 = vsel %vm1266, %v1257, %v1056
        %v1291 = vsel %vm1266, %v1258, %v1058
        %v1292 = vsel %vm1266, %v1259, %v1060
        %v1293 = vsel %vm1266, %v1260, %v1062
        %v1294 = vsel %vm1266, %v1261, %v1064
        %v1295 = vsel %vm1266, %v1262, %v1066
        %v1296 = vsel %vm1266, %v1263, %v1068
        %v1297 = vsel %vm1266, %v1264, %v1070
        %v1298 = vsel %vm1266, %v1265, %v1072
        %vm1299 = vcmask 97280
        %v1300 = vsel %vm1299, %v1267, %v1138
        %v1301 = vsel %vm1299, %v1268, %v1140
        %v1302 = vsel %vm1299, %v1269, %v1142
        %v1303 = vsel %vm1299, %v1270, %v1144
        %v1304 = vsel %vm1299, %v1271, %v1146
        %v1305 = vsel %vm1299, %v1272, %v1148
        %v1306 = vsel %vm1299, %v1273, %v1150
        %v1307 = vsel %vm1299, %v1274, %v1152
        %v1308 = vsel %vm1299, %v1275, %v1154
        %v1309 = vsel %vm1299, %v1276, %v1156
        %v1310 = vsel %vm1299, %v1277, %v1158
        %v1311 = vsel %vm1299, %v1278, %v1160
        %v1312 = vsel %vm1299, %v1279, %v1162
        %v1313 = vsel %vm1299, %v1280, %v1164
        %v1314 = vsel %vm1299, %v1281, %v1166
        %v1315 = vsel %vm1299, %v1282, %v1168
        %v1316 = vsel %vm1299, %v1283, %v1170
        %v1317 = vsel %vm1299, %v1284, %v1172
        %v1318 = vsel %vm1299, %v1285, %v1174
        %v1319 = vsel %vm1299, %v1286, %v1176
        %v1320 = vsel %vm1299, %v1287, %v1178
        %v1321 = vsel %vm1299, %v1288, %v1180
        %v1322 = vsel %vm1299, %v1289, %v1182
        %v1323 = vsel %vm1299, %v1290, %v1184
        %v1324 = vsel %vm1299, %v1291, %v1186
        %v1325 = vsel %vm1299, %v1292, %v1188
        %v1326 = vsel %vm1299, %v1293, %v1190
        %v1327 = vsel %vm1299, %v1294, %v1192
        %v1328 = vsel %vm1299, %v1295, %v1194
        %v1329 = vsel %vm1299, %v1296, %v1196
        %v1330 = vsel %vm1299, %v1297, %v1198
        %v1331 = vsel %vm1299, %v1298, %v1200
        %v1332 = vmul.f32 %v180, %v1300
        %v1333 = vmul.f32 %v185, %v1301
        %v1334 = vmul.f32 %v190, %v1302
        %v1335 = vmul.f32 %v195, %v1303
        %v1336 = vmul.f32 %v200, %v1304
        %v1337 = vmul.f32 %v205, %v1305
        %v1338 = vmul.f32 %v210, %v1306
        %v1339 = vmul.f32 %v215, %v1307
        %v1340 = vmul.f32 %v220, %v1308
        %v1341 = vmul.f32 %v225, %v1309
        %v1342 = vmul.f32 %v230, %v1310
        %v1343 = vmul.f32 %v235, %v1311
        %v1344 = vmul.f32 %v240, %v1312
        %v1345 = vmul.f32 %v245, %v1313
        %v1346 = vmul.f32 %v250, %v1314
        %v1347 = vmul.f32 %v255, %v1315
        %v1348 = vmul.f32 %v260, %v1316
        %v1349 = vmul.f32 %v265, %v1317
        %v1350 = vmul.f32 %v270, %v1318
        %v1351 = vmul.f32 %v275, %v1319
        %v1352 = vmul.f32 %v280, %v1320
        %v1353 = vmul.f32 %v285, %v1321
        %v1354 = vmul.f32 %v290, %v1322
        %v1355 = vmul.f32 %v295, %v1323
        %v1356 = vmul.f32 %v300, %v1324
        %v1357 = vmul.f32 %v305, %v1325
        %v1358 = vmul.f32 %v310, %v1326
        %v1359 = vmul.f32 %v315, %v1327
        %v1360 = vmul.f32 %v320, %v1328
        %v1361 = vmul.f32 %v325, %v1329
        %v1362 = vmul.f32 %v330, %v1330
        %v1363 = vmul.f32 %v335, %v1331
        %v1364 = vmul.f32 %v371, %v1300
        %v1365 = vmul.f32 %v375, %v1301
        %v1366 = vmul.f32 %v379, %v1302
        %v1367 = vmul.f32 %v383, %v1303
        %v1368 = vmul.f32 %v387, %v1304
        %v1369 = vmul.f32 %v391, %v1305
        %v1370 = vmul.f32 %v395, %v1306
        %v1371 = vmul.f32 %v399, %v1307
        %v1372 = vmul.f32 %v403, %v1308
        %v1373 = vmul.f32 %v407, %v1309
        %v1374 = vmul.f32 %v411, %v1310
        %v1375 = vmul.f32 %v415, %v1311
        %v1376 = vmul.f32 %v419, %v1312
        %v1377 = vmul.f32 %v423, %v1313
        %v1378 = vmul.f32 %v427, %v1314
        %v1379 = vmul.f32 %v431, %v1315
        %v1380 = vmul.f32 %v435, %v1316
        %v1381 = vmul.f32 %v439, %v1317
        %v1382 = vmul.f32 %v443, %v1318
        %v1383 = vmul.f32 %v447, %v1319
        %v1384 = vmul.f32 %v451, %v1320
        %v1385 = vmul.f32 %v455, %v1321
        %v1386 = vmul.f32 %v459, %v1322
        %v1387 = vmul.f32 %v463, %v1323
        %v1388 = vmul.f32 %v467, %v1324
        %v1389 = vmul.f32 %v471, %v1325
        %v1390 = vmul.f32 %v475, %v1326
        %v1391 = vmul.f32 %v479, %v1327
        %v1392 = vmul.f32 %v483, %v1328
        %v1393 = vmul.f32 %v487, %v1329
        %v1394 = vmul.f32 %v491, %v1330
        %v1395 = vmul.f32 %v495, %v1331
        %v1396 = vmul.f32 %v531, %v1300
        %v1397 = vmul.f32 %v535, %v1301
        %v1398 = vmul.f32 %v539, %v1302
        %v1399 = vmul.f32 %v543, %v1303
        %v1400 = vmul.f32 %v547, %v1304
        %v1401 = vmul.f32 %v551, %v1305
        %v1402 = vmul.f32 %v555, %v1306
        %v1403 = vmul.f32 %v559, %v1307
        %v1404 = vmul.f32 %v563, %v1308
        %v1405 = vmul.f32 %v567, %v1309
        %v1406 = vmul.f32 %v571, %v1310
        %v1407 = vmul.f32 %v575, %v1311
        %v1408 = vmul.f32 %v579, %v1312
        %v1409 = vmul.f32 %v583, %v1313
        %v1410 = vmul.f32 %v587, %v1314
        %v1411 = vmul.f32 %v591, %v1315
        %v1412 = vmul.f32 %v595, %v1316
        %v1413 = vmul.f32 %v599, %v1317
        %v1414 = vmul.f32 %v603, %v1318
        %v1415 = vmul.f32 %v607, %v1319
        %v1416 = vmul.f32 %v611, %v1320
        %v1417 = vmul.f32 %v615, %v1321
        %v1418 = vmul.f32 %v619, %v1322
        %v1419 = vmul.f32 %v623, %v1323
        %v1420 = vmul.f32 %v627, %v1324
        %v1421 = vmul.f32 %v631, %v1325
        %v1422 = vmul.f32 %v635, %v1326
        %v1423 = vmul.f32 %v639, %v1327
        %v1424 = vmul.f32 %v643, %v1328
        %v1425 = vmul.f32 %v647, %v1329
        %v1426 = vmul.f32 %v651, %v1330
        %v1427 = vmul.f32 %v655, %v1331
        %v1428 = vmul.f32 %v691, %v1300
        %v1429 = vmul.f32 %v695, %v1301
        %v1430 = vmul.f32 %v699, %v1302
        %v1431 = vmul.f32 %v703, %v1303
        %v1432 = vmul.f32 %v707, %v1304
        %v1433 = vmul.f32 %v711, %v1305
        %v1434 = vmul.f32 %v715, %v1306
        %v1435 = vmul.f32 %v719, %v1307
        %v1436 = vmul.f32 %v723, %v1308
        %v1437 = vmul.f32 %v727, %v1309
        %v1438 = vmul.f32 %v731, %v1310
        %v1439 = vmul.f32 %v735, %v1311
        %v1440 = vmul.f32 %v739, %v1312
        %v1441 = vmul.f32 %v743, %v1313
        %v1442 = vmul.f32 %v747, %v1314
        %v1443 = vmul.f32 %v751, %v1315
        %v1444 = vmul.f32 %v755, %v1316
        %v1445 = vmul.f32 %v759, %v1317
        %v1446 = vmul.f32 %v763, %v1318
        %v1447 = vmul.f32 %v767, %v1319
        %v1448 = vmul.f32 %v771, %v1320
        %v1449 = vmul.f32 %v775, %v1321
        %v1450 = vmul.f32 %v779, %v1322
        %v1451 = vmul.f32 %v783, %v1323
        %v1452 = vmul.f32 %v787, %v1324
        %v1453 = vmul.f32 %v791, %v1325
        %v1454 = vmul.f32 %v795, %v1326
        %v1455 = vmul.f32 %v799, %v1327
        %v1456 = vmul.f32 %v803, %v1328
        %v1457 = vmul.f32 %v807, %v1329
        %v1458 = vmul.f32 %v811, %v1330
        %v1459 = vmul.f32 %v815, %v1331
        %1492 = vrot.lane.b32.xlu0 %v1364, 16
        %v1493 = vpop.permute.xlu0 %1492
        %1494 = vrot.lane.b32.xlu0 %v1365, 16
        %v1495 = vpop.permute.xlu0 %1494
        %1496 = vrot.lane.b32.xlu0 %v1366, 16
        %v1497 = vpop.permute.xlu0 %1496
        %1498 = vrot.lane.b32.xlu0 %v1367, 16
        %v1499 = vpop.permute.xlu0 %1498
        %1500 = vrot.lane.b32.xlu0 %v1368, 16
        %v1501 = vpop.permute.xlu0 %1500
        %1502 = vrot.lane.b32.xlu0 %v1369, 16
        %v1503 = vpop.permute.xlu0 %1502
        %1504 = vrot.lane.b32.xlu0 %v1370, 16
        %v1505 = vpop.permute.xlu0 %1504
        %1506 = vrot.lane.b32.xlu0 %v1371, 16
        %v1507 = vpop.permute.xlu0 %1506
        %1508 = vrot.lane.b32.xlu0 %v1372, 16
        %v1509 = vpop.permute.xlu0 %1508
        %1510 = vrot.lane.b32.xlu0 %v1373, 16
        %v1511 = vpop.permute.xlu0 %1510
        %1512 = vrot.lane.b32.xlu0 %v1374, 16
        %v1513 = vpop.permute.xlu0 %1512
        %1514 = vrot.lane.b32.xlu0 %v1375, 16
        %v1515 = vpop.permute.xlu0 %1514
        %1516 = vrot.lane.b32.xlu0 %v1376, 16
        %v1517 = vpop.permute.xlu0 %1516
        %1518 = vrot.lane.b32.xlu0 %v1377, 16
        %v1519 = vpop.permute.xlu0 %1518
        %1520 = vrot.lane.b32.xlu0 %v1378, 16
        %v1521 = vpop.permute.xlu0 %1520
        %1522 = vrot.lane.b32.xlu0 %v1379, 16
        %v1523 = vpop.permute.xlu0 %1522
        %1524 = vrot.lane.b32.xlu0 %v1380, 16
        %v1525 = vpop.permute.xlu0 %1524
        %1526 = vrot.lane.b32.xlu0 %v1381, 16
        %v1527 = vpop.permute.xlu0 %1526
        %1528 = vrot.lane.b32.xlu0 %v1382, 16
        %v1529 = vpop.permute.xlu0 %1528
        %1530 = vrot.lane.b32.xlu0 %v1383, 16
        %v1531 = vpop.permute.xlu0 %1530
        %1532 = vrot.lane.b32.xlu0 %v1384, 16
        %v1533 = vpop.permute.xlu0 %1532
        %1534 = vrot.lane.b32.xlu0 %v1385, 16
        %v1535 = vpop.permute.xlu0 %1534
        %1536 = vrot.lane.b32.xlu0 %v1386, 16
        %v1537 = vpop.permute.xlu0 %1536
        %1538 = vrot.lane.b32.xlu0 %v1387, 16
        %v1539 = vpop.permute.xlu0 %1538
        %1540 = vrot.lane.b32.xlu0 %v1388, 16
        %v1541 = vpop.permute.xlu0 %1540
        %1542 = vrot.lane.b32.xlu0 %v1389, 16
        %v1543 = vpop.permute.xlu0 %1542
        %1544 = vrot.lane.b32.xlu0 %v1390, 16
        %v1545 = vpop.permute.xlu0 %1544
        %1546 = vrot.lane.b32.xlu0 %v1391, 16
        %v1547 = vpop.permute.xlu0 %1546
        %1548 = vrot.lane.b32.xlu0 %v1392, 16
        %v1549 = vpop.permute.xlu0 %1548
        %1550 = vrot.lane.b32.xlu0 %v1393, 16
        %v1551 = vpop.permute.xlu0 %1550
        %1552 = vrot.lane.b32.xlu0 %v1394, 16
        %v1553 = vpop.permute.xlu0 %1552
        %1554 = vrot.lane.b32.xlu0 %v1395, 16
        %v1555 = vpop.permute.xlu0 %1554
        %1620 = vrot.lane.b32.xlu0 %v1396, 32
        %v1621 = vpop.permute.xlu0 %1620
        %1622 = vrot.lane.b32.xlu0 %v1397, 32
        %v1623 = vpop.permute.xlu0 %1622
        %1624 = vrot.lane.b32.xlu0 %v1398, 32
        %v1625 = vpop.permute.xlu0 %1624
        %1626 = vrot.lane.b32.xlu0 %v1399, 32
        %v1627 = vpop.permute.xlu0 %1626
        %1628 = vrot.lane.b32.xlu0 %v1400, 32
        %v1629 = vpop.permute.xlu0 %1628
        %1630 = vrot.lane.b32.xlu0 %v1401, 32
        %v1631 = vpop.permute.xlu0 %1630
        %1632 = vrot.lane.b32.xlu0 %v1402, 32
        %v1633 = vpop.permute.xlu0 %1632
        %1634 = vrot.lane.b32.xlu0 %v1403, 32
        %v1635 = vpop.permute.xlu0 %1634
        %1636 = vrot.lane.b32.xlu0 %v1404, 32
        %v1637 = vpop.permute.xlu0 %1636
        %1638 = vrot.lane.b32.xlu0 %v1405, 32
        %v1639 = vpop.permute.xlu0 %1638
        %1640 = vrot.lane.b32.xlu0 %v1406, 32
        %v1641 = vpop.permute.xlu0 %1640
        %1642 = vrot.lane.b32.xlu0 %v1407, 32
        %v1643 = vpop.permute.xlu0 %1642
        %1644 = vrot.lane.b32.xlu0 %v1408, 32
        %v1645 = vpop.permute.xlu0 %1644
        %1646 = vrot.lane.b32.xlu0 %v1409, 32
        %v1647 = vpop.permute.xlu0 %1646
        %1648 = vrot.lane.b32.xlu0 %v1410, 32
        %v1649 = vpop.permute.xlu0 %1648
        %1650 = vrot.lane.b32.xlu0 %v1411, 32
        %v1651 = vpop.permute.xlu0 %1650
        %1652 = vrot.lane.b32.xlu0 %v1412, 32
        %v1653 = vpop.permute.xlu0 %1652
        %1654 = vrot.lane.b32.xlu0 %v1413, 32
        %v1655 = vpop.permute.xlu0 %1654
        %1656 = vrot.lane.b32.xlu0 %v1414, 32
        %v1657 = vpop.permute.xlu0 %1656
        %1658 = vrot.lane.b32.xlu0 %v1415, 32
        %v1659 = vpop.permute.xlu0 %1658
        %1660 = vrot.lane.b32.xlu0 %v1416, 32
        %v1661 = vpop.permute.xlu0 %1660
        %1662 = vrot.lane.b32.xlu0 %v1417, 32
        %v1663 = vpop.permute.xlu0 %1662
        %1664 = vrot.lane.b32.xlu0 %v1418, 32
        %v1665 = vpop.permute.xlu0 %1664
        %1666 = vrot.lane.b32.xlu0 %v1419, 32
        %v1667 = vpop.permute.xlu0 %1666
        %1668 = vrot.lane.b32.xlu0 %v1420, 32
        %v1669 = vpop.permute.xlu0 %1668
        %1670 = vrot.lane.b32.xlu0 %v1421, 32
        %v1671 = vpop.permute.xlu0 %1670
        %1672 = vrot.lane.b32.xlu0 %v1422, 32
        %v1673 = vpop.permute.xlu0 %1672
        %1674 = vrot.lane.b32.xlu0 %v1423, 32
        %v1675 = vpop.permute.xlu0 %1674
        %1676 = vrot.lane.b32.xlu0 %v1424, 32
        %v1677 = vpop.permute.xlu0 %1676
        %1678 = vrot.lane.b32.xlu0 %v1425, 32
        %v1679 = vpop.permute.xlu0 %1678
        %1680 = vrot.lane.b32.xlu0 %v1426, 32
        %v1681 = vpop.permute.xlu0 %1680
        %1682 = vrot.lane.b32.xlu0 %v1427, 32
        %v1683 = vpop.permute.xlu0 %1682
        %1748 = vrot.lane.b32.xlu0 %v1428, 48
        %v1749 = vpop.permute.xlu0 %1748
        %1750 = vrot.lane.b32.xlu0 %v1429, 48
        %v1751 = vpop.permute.xlu0 %1750
        %1752 = vrot.lane.b32.xlu0 %v1430, 48
        %v1753 = vpop.permute.xlu0 %1752
        %1754 = vrot.lane.b32.xlu0 %v1431, 48
        %v1755 = vpop.permute.xlu0 %1754
        %1756 = vrot.lane.b32.xlu0 %v1432, 48
        %v1757 = vpop.permute.xlu0 %1756
        %1758 = vrot.lane.b32.xlu0 %v1433, 48
        %v1759 = vpop.permute.xlu0 %1758
        %1760 = vrot.lane.b32.xlu0 %v1434, 48
        %v1761 = vpop.permute.xlu0 %1760
        %1762 = vrot.lane.b32.xlu0 %v1435, 48
        %v1763 = vpop.permute.xlu0 %1762
        %1764 = vrot.lane.b32.xlu0 %v1436, 48
        %v1765 = vpop.permute.xlu0 %1764
        %1766 = vrot.lane.b32.xlu0 %v1437, 48
        %v1767 = vpop.permute.xlu0 %1766
        %1768 = vrot.lane.b32.xlu0 %v1438, 48
        %v1769 = vpop.permute.xlu0 %1768
        %1770 = vrot.lane.b32.xlu0 %v1439, 48
        %v1771 = vpop.permute.xlu0 %1770
        %1772 = vrot.lane.b32.xlu0 %v1440, 48
        %v1773 = vpop.permute.xlu0 %1772
        %1774 = vrot.lane.b32.xlu0 %v1441, 48
        %v1775 = vpop.permute.xlu0 %1774
        %1776 = vrot.lane.b32.xlu0 %v1442, 48
        %v1777 = vpop.permute.xlu0 %1776
        %1778 = vrot.lane.b32.xlu0 %v1443, 48
        %v1779 = vpop.permute.xlu0 %1778
        %1780 = vrot.lane.b32.xlu0 %v1444, 48
        %v1781 = vpop.permute.xlu0 %1780
        %1782 = vrot.lane.b32.xlu0 %v1445, 48
        %v1783 = vpop.permute.xlu0 %1782
        %1784 = vrot.lane.b32.xlu0 %v1446, 48
        %v1785 = vpop.permute.xlu0 %1784
        %1786 = vrot.lane.b32.xlu0 %v1447, 48
        %v1787 = vpop.permute.xlu0 %1786
        %1788 = vrot.lane.b32.xlu0 %v1448, 48
        %v1789 = vpop.permute.xlu0 %1788
        %1790 = vrot.lane.b32.xlu0 %v1449, 48
        %v1791 = vpop.permute.xlu0 %1790
        %1792 = vrot.lane.b32.xlu0 %v1450, 48
        %v1793 = vpop.permute.xlu0 %1792
        %1794 = vrot.lane.b32.xlu0 %v1451, 48
        %v1795 = vpop.permute.xlu0 %1794
        %1796 = vrot.lane.b32.xlu0 %v1452, 48
        %v1797 = vpop.permute.xlu0 %1796
        %1798 = vrot.lane.b32.xlu0 %v1453, 48
        %v1799 = vpop.permute.xlu0 %1798
        %1800 = vrot.lane.b32.xlu0 %v1454, 48
        %v1801 = vpop.permute.xlu0 %1800
        %1802 = vrot.lane.b32.xlu0 %v1455, 48
        %v1803 = vpop.permute.xlu0 %1802
        %1804 = vrot.lane.b32.xlu0 %v1456, 48
        %v1805 = vpop.permute.xlu0 %1804
        %1806 = vrot.lane.b32.xlu0 %v1457, 48
        %v1807 = vpop.permute.xlu0 %1806
        %1808 = vrot.lane.b32.xlu0 %v1458, 48
        %v1809 = vpop.permute.xlu0 %1808
        %1810 = vrot.lane.b32.xlu0 %v1459, 48
        %v1811 = vpop.permute.xlu0 %1810
        %vm1844 = vcmask 130048
        %v1845 = vsel %vm1844, %v1332, %v1493
        %v1846 = vsel %vm1844, %v1333, %v1495
        %v1847 = vsel %vm1844, %v1334, %v1497
        %v1848 = vsel %vm1844, %v1335, %v1499
        %v1849 = vsel %vm1844, %v1336, %v1501
        %v1850 = vsel %vm1844, %v1337, %v1503
        %v1851 = vsel %vm1844, %v1338, %v1505
        %v1852 = vsel %vm1844, %v1339, %v1507
        %v1853 = vsel %vm1844, %v1340, %v1509
        %v1854 = vsel %vm1844, %v1341, %v1511
        %v1855 = vsel %vm1844, %v1342, %v1513
        %v1856 = vsel %vm1844, %v1343, %v1515
        %v1857 = vsel %vm1844, %v1344, %v1517
        %v1858 = vsel %vm1844, %v1345, %v1519
        %v1859 = vsel %vm1844, %v1346, %v1521
        %v1860 = vsel %vm1844, %v1347, %v1523
        %v1861 = vsel %vm1844, %v1348, %v1525
        %v1862 = vsel %vm1844, %v1349, %v1527
        %v1863 = vsel %vm1844, %v1350, %v1529
        %v1864 = vsel %vm1844, %v1351, %v1531
        %v1865 = vsel %vm1844, %v1352, %v1533
        %v1866 = vsel %vm1844, %v1353, %v1535
        %v1867 = vsel %vm1844, %v1354, %v1537
        %v1868 = vsel %vm1844, %v1355, %v1539
        %v1869 = vsel %vm1844, %v1356, %v1541
        %v1870 = vsel %vm1844, %v1357, %v1543
        %v1871 = vsel %vm1844, %v1358, %v1545
        %v1872 = vsel %vm1844, %v1359, %v1547
        %v1873 = vsel %vm1844, %v1360, %v1549
        %v1874 = vsel %vm1844, %v1361, %v1551
        %v1875 = vsel %vm1844, %v1362, %v1553
        %v1876 = vsel %vm1844, %v1363, %v1555
        %vm1877 = vcmask 261120
        %v1878 = vsel %vm1877, %v1845, %v1621
        %v1879 = vsel %vm1877, %v1846, %v1623
        %v1880 = vsel %vm1877, %v1847, %v1625
        %v1881 = vsel %vm1877, %v1848, %v1627
        %v1882 = vsel %vm1877, %v1849, %v1629
        %v1883 = vsel %vm1877, %v1850, %v1631
        %v1884 = vsel %vm1877, %v1851, %v1633
        %v1885 = vsel %vm1877, %v1852, %v1635
        %v1886 = vsel %vm1877, %v1853, %v1637
        %v1887 = vsel %vm1877, %v1854, %v1639
        %v1888 = vsel %vm1877, %v1855, %v1641
        %v1889 = vsel %vm1877, %v1856, %v1643
        %v1890 = vsel %vm1877, %v1857, %v1645
        %v1891 = vsel %vm1877, %v1858, %v1647
        %v1892 = vsel %vm1877, %v1859, %v1649
        %v1893 = vsel %vm1877, %v1860, %v1651
        %v1894 = vsel %vm1877, %v1861, %v1653
        %v1895 = vsel %vm1877, %v1862, %v1655
        %v1896 = vsel %vm1877, %v1863, %v1657
        %v1897 = vsel %vm1877, %v1864, %v1659
        %v1898 = vsel %vm1877, %v1865, %v1661
        %v1899 = vsel %vm1877, %v1866, %v1663
        %v1900 = vsel %vm1877, %v1867, %v1665
        %v1901 = vsel %vm1877, %v1868, %v1667
        %v1902 = vsel %vm1877, %v1869, %v1669
        %v1903 = vsel %vm1877, %v1870, %v1671
        %v1904 = vsel %vm1877, %v1871, %v1673
        %v1905 = vsel %vm1877, %v1872, %v1675
        %v1906 = vsel %vm1877, %v1873, %v1677
        %v1907 = vsel %vm1877, %v1874, %v1679
        %v1908 = vsel %vm1877, %v1875, %v1681
        %v1909 = vsel %vm1877, %v1876, %v1683
        %vm1910 = vcmask 392192
        %v1911 = vsel %vm1910, %v1878, %v1749
        %v1912 = vsel %vm1910, %v1879, %v1751
        %v1913 = vsel %vm1910, %v1880, %v1753
        %v1914 = vsel %vm1910, %v1881, %v1755
        %v1915 = vsel %vm1910, %v1882, %v1757
        %v1916 = vsel %vm1910, %v1883, %v1759
        %v1917 = vsel %vm1910, %v1884, %v1761
        %v1918 = vsel %vm1910, %v1885, %v1763
        %v1919 = vsel %vm1910, %v1886, %v1765
        %v1920 = vsel %vm1910, %v1887, %v1767
        %v1921 = vsel %vm1910, %v1888, %v1769
        %v1922 = vsel %vm1910, %v1889, %v1771
        %v1923 = vsel %vm1910, %v1890, %v1773
        %v1924 = vsel %vm1910, %v1891, %v1775
        %v1925 = vsel %vm1910, %v1892, %v1777
        %v1926 = vsel %vm1910, %v1893, %v1779
        %v1927 = vsel %vm1910, %v1894, %v1781
        %v1928 = vsel %vm1910, %v1895, %v1783
        %v1929 = vsel %vm1910, %v1896, %v1785
        %v1930 = vsel %vm1910, %v1897, %v1787
        %v1931 = vsel %vm1910, %v1898, %v1789
        %v1932 = vsel %vm1910, %v1899, %v1791
        %v1933 = vsel %vm1910, %v1900, %v1793
        %v1934 = vsel %vm1910, %v1901, %v1795
        %v1935 = vsel %vm1910, %v1902, %v1797
        %v1936 = vsel %vm1910, %v1903, %v1799
        %v1937 = vsel %vm1910, %v1904, %v1801
        %v1938 = vsel %vm1910, %v1905, %v1803
        %v1939 = vsel %vm1910, %v1906, %v1805
        %v1940 = vsel %vm1910, %v1907, %v1807
        %v1941 = vsel %vm1910, %v1908, %v1809
        %v1942 = vsel %vm1910, %v1909, %v1811
        %1943 = vrot.lane.b32.xlu0 %v145, 1
        %v1944 = vpop.permute.xlu0 %1943
        %1945 = vrot.lane.b32.xlu0 %v146, 1
        %v1946 = vpop.permute.xlu0 %1945
        %1947 = vrot.lane.b32.xlu0 %v147, 1
        %v1948 = vpop.permute.xlu0 %1947
        %1949 = vrot.lane.b32.xlu0 %v148, 1
        %v1950 = vpop.permute.xlu0 %1949
        %1951 = vrot.lane.b32.xlu0 %v149, 1
        %v1952 = vpop.permute.xlu0 %1951
        %1953 = vrot.lane.b32.xlu0 %v150, 1
        %v1954 = vpop.permute.xlu0 %1953
        %1955 = vrot.lane.b32.xlu0 %v151, 1
        %v1956 = vpop.permute.xlu0 %1955
        %1957 = vrot.lane.b32.xlu0 %v152, 1
        %v1958 = vpop.permute.xlu0 %1957
        %1959 = vrot.lane.b32.xlu0 %v153, 1
        %v1960 = vpop.permute.xlu0 %1959
        %1961 = vrot.lane.b32.xlu0 %v154, 1
        %v1962 = vpop.permute.xlu0 %1961
        %1963 = vrot.lane.b32.xlu0 %v155, 1
        %v1964 = vpop.permute.xlu0 %1963
        %1965 = vrot.lane.b32.xlu0 %v156, 1
        %v1966 = vpop.permute.xlu0 %1965
        %1967 = vrot.lane.b32.xlu0 %v157, 1
        %v1968 = vpop.permute.xlu0 %1967
        %1969 = vrot.lane.b32.xlu0 %v158, 1
        %v1970 = vpop.permute.xlu0 %1969
        %1971 = vrot.lane.b32.xlu0 %v159, 1
        %v1972 = vpop.permute.xlu0 %1971
        %1973 = vrot.lane.b32.xlu0 %v160, 1
        %v1974 = vpop.permute.xlu0 %1973
        %1975 = vrot.lane.b32.xlu0 %v161, 1
        %v1976 = vpop.permute.xlu0 %1975
        %1977 = vrot.lane.b32.xlu0 %v162, 1
        %v1978 = vpop.permute.xlu0 %1977
        %1979 = vrot.lane.b32.xlu0 %v163, 1
        %v1980 = vpop.permute.xlu0 %1979
        %1981 = vrot.lane.b32.xlu0 %v164, 1
        %v1982 = vpop.permute.xlu0 %1981
        %1983 = vrot.lane.b32.xlu0 %v165, 1
        %v1984 = vpop.permute.xlu0 %1983
        %1985 = vrot.lane.b32.xlu0 %v166, 1
        %v1986 = vpop.permute.xlu0 %1985
        %1987 = vrot.lane.b32.xlu0 %v167, 1
        %v1988 = vpop.permute.xlu0 %1987
        %1989 = vrot.lane.b32.xlu0 %v168, 1
        %v1990 = vpop.permute.xlu0 %1989
        %1991 = vrot.lane.b32.xlu0 %v169, 1
        %v1992 = vpop.permute.xlu0 %1991
        %1993 = vrot.lane.b32.xlu0 %v170, 1
        %v1994 = vpop.permute.xlu0 %1993
        %1995 = vrot.lane.b32.xlu0 %v171, 1
        %v1996 = vpop.permute.xlu0 %1995
        %1997 = vrot.lane.b32.xlu0 %v172, 1
        %v1998 = vpop.permute.xlu0 %1997
        %1999 = vrot.lane.b32.xlu0 %v173, 1
        %v2000 = vpop.permute.xlu0 %1999
        %2001 = vrot.lane.b32.xlu0 %v174, 1
        %v2002 = vpop.permute.xlu0 %2001
        %2003 = vrot.lane.b32.xlu0 %v175, 1
        %v2004 = vpop.permute.xlu0 %2003
        %2005 = vrot.lane.b32.xlu0 %v176, 1
        %v2006 = vpop.permute.xlu0 %2005
        %2071 = vrot.lane.b32.xlu0 %v1300, 5
        %v2072 = vpop.permute.xlu0 %2071
        %2073 = vrot.lane.b32.xlu0 %v1301, 5
        %v2074 = vpop.permute.xlu0 %2073
        %2075 = vrot.lane.b32.xlu0 %v1302, 5
        %v2076 = vpop.permute.xlu0 %2075
        %2077 = vrot.lane.b32.xlu0 %v1303, 5
        %v2078 = vpop.permute.xlu0 %2077
        %2079 = vrot.lane.b32.xlu0 %v1304, 5
        %v2080 = vpop.permute.xlu0 %2079
        %2081 = vrot.lane.b32.xlu0 %v1305, 5
        %v2082 = vpop.permute.xlu0 %2081
        %2083 = vrot.lane.b32.xlu0 %v1306, 5
        %v2084 = vpop.permute.xlu0 %2083
        %2085 = vrot.lane.b32.xlu0 %v1307, 5
        %v2086 = vpop.permute.xlu0 %2085
        %2087 = vrot.lane.b32.xlu0 %v1308, 5
        %v2088 = vpop.permute.xlu0 %2087
        %2089 = vrot.lane.b32.xlu0 %v1309, 5
        %v2090 = vpop.permute.xlu0 %2089
        %2091 = vrot.lane.b32.xlu0 %v1310, 5
        %v2092 = vpop.permute.xlu0 %2091
        %2093 = vrot.lane.b32.xlu0 %v1311, 5
        %v2094 = vpop.permute.xlu0 %2093
        %2095 = vrot.lane.b32.xlu0 %v1312, 5
        %v2096 = vpop.permute.xlu0 %2095
        %2097 = vrot.lane.b32.xlu0 %v1313, 5
        %v2098 = vpop.permute.xlu0 %2097
        %2099 = vrot.lane.b32.xlu0 %v1314, 5
        %v2100 = vpop.permute.xlu0 %2099
        %2101 = vrot.lane.b32.xlu0 %v1315, 5
        %v2102 = vpop.permute.xlu0 %2101
        %2103 = vrot.lane.b32.xlu0 %v1316, 5
        %v2104 = vpop.permute.xlu0 %2103
        %2105 = vrot.lane.b32.xlu0 %v1317, 5
        %v2106 = vpop.permute.xlu0 %2105
        %2107 = vrot.lane.b32.xlu0 %v1318, 5
        %v2108 = vpop.permute.xlu0 %2107
        %2109 = vrot.lane.b32.xlu0 %v1319, 5
        %v2110 = vpop.permute.xlu0 %2109
        %2111 = vrot.lane.b32.xlu0 %v1320, 5
        %v2112 = vpop.permute.xlu0 %2111
        %2113 = vrot.lane.b32.xlu0 %v1321, 5
        %v2114 = vpop.permute.xlu0 %2113
        %2115 = vrot.lane.b32.xlu0 %v1322, 5
        %v2116 = vpop.permute.xlu0 %2115
        %2117 = vrot.lane.b32.xlu0 %v1323, 5
        %v2118 = vpop.permute.xlu0 %2117
        %2119 = vrot.lane.b32.xlu0 %v1324, 5
        %v2120 = vpop.permute.xlu0 %2119
        %2121 = vrot.lane.b32.xlu0 %v1325, 5
        %v2122 = vpop.permute.xlu0 %2121
        %2123 = vrot.lane.b32.xlu0 %v1326, 5
        %v2124 = vpop.permute.xlu0 %2123
        %2125 = vrot.lane.b32.xlu0 %v1327, 5
        %v2126 = vpop.permute.xlu0 %2125
        %2127 = vrot.lane.b32.xlu0 %v1328, 5
        %v2128 = vpop.permute.xlu0 %2127
        %2129 = vrot.lane.b32.xlu0 %v1329, 5
        %v2130 = vpop.permute.xlu0 %2129
        %2131 = vrot.lane.b32.xlu0 %v1330, 5
        %v2132 = vpop.permute.xlu0 %2131
        %2133 = vrot.lane.b32.xlu0 %v1331, 5
        %v2134 = vpop.permute.xlu0 %2133
        %2199 = vrot.lane.b32.xlu0 %v1911, 21
        %v2200 = vpop.permute.xlu0 %2199
        %2201 = vrot.lane.b32.xlu0 %v1912, 21
        %v2202 = vpop.permute.xlu0 %2201
        %2203 = vrot.lane.b32.xlu0 %v1913, 21
        %v2204 = vpop.permute.xlu0 %2203
        %2205 = vrot.lane.b32.xlu0 %v1914, 21
        %v2206 = vpop.permute.xlu0 %2205
        %2207 = vrot.lane.b32.xlu0 %v1915, 21
        %v2208 = vpop.permute.xlu0 %2207
        %2209 = vrot.lane.b32.xlu0 %v1916, 21
        %v2210 = vpop.permute.xlu0 %2209
        %2211 = vrot.lane.b32.xlu0 %v1917, 21
        %v2212 = vpop.permute.xlu0 %2211
        %2213 = vrot.lane.b32.xlu0 %v1918, 21
        %v2214 = vpop.permute.xlu0 %2213
        %2215 = vrot.lane.b32.xlu0 %v1919, 21
        %v2216 = vpop.permute.xlu0 %2215
        %2217 = vrot.lane.b32.xlu0 %v1920, 21
        %v2218 = vpop.permute.xlu0 %2217
        %2219 = vrot.lane.b32.xlu0 %v1921, 21
        %v2220 = vpop.permute.xlu0 %2219
        %2221 = vrot.lane.b32.xlu0 %v1922, 21
        %v2222 = vpop.permute.xlu0 %2221
        %2223 = vrot.lane.b32.xlu0 %v1923, 21
        %v2224 = vpop.permute.xlu0 %2223
        %2225 = vrot.lane.b32.xlu0 %v1924, 21
        %v2226 = vpop.permute.xlu0 %2225
        %2227 = vrot.lane.b32.xlu0 %v1925, 21
        %v2228 = vpop.permute.xlu0 %2227
        %2229 = vrot.lane.b32.xlu0 %v1926, 21
        %v2230 = vpop.permute.xlu0 %2229
        %2231 = vrot.lane.b32.xlu0 %v1927, 21
        %v2232 = vpop.permute.xlu0 %2231
        %2233 = vrot.lane.b32.xlu0 %v1928, 21
        %v2234 = vpop.permute.xlu0 %2233
        %2235 = vrot.lane.b32.xlu0 %v1929, 21
        %v2236 = vpop.permute.xlu0 %2235
        %2237 = vrot.lane.b32.xlu0 %v1930, 21
        %v2238 = vpop.permute.xlu0 %2237
        %2239 = vrot.lane.b32.xlu0 %v1931, 21
        %v2240 = vpop.permute.xlu0 %2239
        %2241 = vrot.lane.b32.xlu0 %v1932, 21
        %v2242 = vpop.permute.xlu0 %2241
        %2243 = vrot.lane.b32.xlu0 %v1933, 21
        %v2244 = vpop.permute.xlu0 %2243
        %2245 = vrot.lane.b32.xlu0 %v1934, 21
        %v2246 = vpop.permute.xlu0 %2245
        %2247 = vrot.lane.b32.xlu0 %v1935, 21
        %v2248 = vpop.permute.xlu0 %2247
        %2249 = vrot.lane.b32.xlu0 %v1936, 21
        %v2250 = vpop.permute.xlu0 %2249
        %2251 = vrot.lane.b32.xlu0 %v1937, 21
        %v2252 = vpop.permute.xlu0 %2251
        %2253 = vrot.lane.b32.xlu0 %v1938, 21
        %v2254 = vpop.permute.xlu0 %2253
        %2255 = vrot.lane.b32.xlu0 %v1939, 21
        %v2256 = vpop.permute.xlu0 %2255
        %2257 = vrot.lane.b32.xlu0 %v1940, 21
        %v2258 = vpop.permute.xlu0 %2257
        %2259 = vrot.lane.b32.xlu0 %v1941, 21
        %v2260 = vpop.permute.xlu0 %2259
        %2261 = vrot.lane.b32.xlu0 %v1942, 21
        %v2262 = vpop.permute.xlu0 %2261
        %vm2295 = vcmask 7168
        %v2296 = vsel %vm2295, 1.0, %v1944
        %v2297 = vsel %vm2295, 1.0, %v1946
        %v2298 = vsel %vm2295, 1.0, %v1948
        %v2299 = vsel %vm2295, 1.0, %v1950
        %v2300 = vsel %vm2295, 1.0, %v1952
        %v2301 = vsel %vm2295, 1.0, %v1954
        %v2302 = vsel %vm2295, 1.0, %v1956
        %v2303 = vsel %vm2295, 1.0, %v1958
        %v2304 = vsel %vm2295, 1.0, %v1960
        %v2305 = vsel %vm2295, 1.0, %v1962
        %v2306 = vsel %vm2295, 1.0, %v1964
        %v2307 = vsel %vm2295, 1.0, %v1966
        %v2308 = vsel %vm2295, 1.0, %v1968
        %v2309 = vsel %vm2295, 1.0, %v1970
        %v2310 = vsel %vm2295, 1.0, %v1972
        %v2311 = vsel %vm2295, 1.0, %v1974
        %v2312 = vsel %vm2295, 1.0, %v1976
        %v2313 = vsel %vm2295, 1.0, %v1978
        %v2314 = vsel %vm2295, 1.0, %v1980
        %v2315 = vsel %vm2295, 1.0, %v1982
        %v2316 = vsel %vm2295, 1.0, %v1984
        %v2317 = vsel %vm2295, 1.0, %v1986
        %v2318 = vsel %vm2295, 1.0, %v1988
        %v2319 = vsel %vm2295, 1.0, %v1990
        %v2320 = vsel %vm2295, 1.0, %v1992
        %v2321 = vsel %vm2295, 1.0, %v1994
        %v2322 = vsel %vm2295, 1.0, %v1996
        %v2323 = vsel %vm2295, 1.0, %v1998
        %v2324 = vsel %vm2295, 1.0, %v2000
        %v2325 = vsel %vm2295, 1.0, %v2002
        %v2326 = vsel %vm2295, 1.0, %v2004
        %v2327 = vsel %vm2295, 1.0, %v2006
        %vm2328 = vcmask 39936
        %v2329 = vsel %vm2328, %v2296, %v2072
        %v2330 = vsel %vm2328, %v2297, %v2074
        %v2331 = vsel %vm2328, %v2298, %v2076
        %v2332 = vsel %vm2328, %v2299, %v2078
        %v2333 = vsel %vm2328, %v2300, %v2080
        %v2334 = vsel %vm2328, %v2301, %v2082
        %v2335 = vsel %vm2328, %v2302, %v2084
        %v2336 = vsel %vm2328, %v2303, %v2086
        %v2337 = vsel %vm2328, %v2304, %v2088
        %v2338 = vsel %vm2328, %v2305, %v2090
        %v2339 = vsel %vm2328, %v2306, %v2092
        %v2340 = vsel %vm2328, %v2307, %v2094
        %v2341 = vsel %vm2328, %v2308, %v2096
        %v2342 = vsel %vm2328, %v2309, %v2098
        %v2343 = vsel %vm2328, %v2310, %v2100
        %v2344 = vsel %vm2328, %v2311, %v2102
        %v2345 = vsel %vm2328, %v2312, %v2104
        %v2346 = vsel %vm2328, %v2313, %v2106
        %v2347 = vsel %vm2328, %v2314, %v2108
        %v2348 = vsel %vm2328, %v2315, %v2110
        %v2349 = vsel %vm2328, %v2316, %v2112
        %v2350 = vsel %vm2328, %v2317, %v2114
        %v2351 = vsel %vm2328, %v2318, %v2116
        %v2352 = vsel %vm2328, %v2319, %v2118
        %v2353 = vsel %vm2328, %v2320, %v2120
        %v2354 = vsel %vm2328, %v2321, %v2122
        %v2355 = vsel %vm2328, %v2322, %v2124
        %v2356 = vsel %vm2328, %v2323, %v2126
        %v2357 = vsel %vm2328, %v2324, %v2128
        %v2358 = vsel %vm2328, %v2325, %v2130
        %v2359 = vsel %vm2328, %v2326, %v2132
        %v2360 = vsel %vm2328, %v2327, %v2134
        %vm2361 = vcmask 171008
        %v2362 = vsel %vm2361, %v2329, %v2200
        %v2363 = vsel %vm2361, %v2330, %v2202
        %v2364 = vsel %vm2361, %v2331, %v2204
        %v2365 = vsel %vm2361, %v2332, %v2206
        %v2366 = vsel %vm2361, %v2333, %v2208
        %v2367 = vsel %vm2361, %v2334, %v2210
        %v2368 = vsel %vm2361, %v2335, %v2212
        %v2369 = vsel %vm2361, %v2336, %v2214
        %v2370 = vsel %vm2361, %v2337, %v2216
        %v2371 = vsel %vm2361, %v2338, %v2218
        %v2372 = vsel %vm2361, %v2339, %v2220
        %v2373 = vsel %vm2361, %v2340, %v2222
        %v2374 = vsel %vm2361, %v2341, %v2224
        %v2375 = vsel %vm2361, %v2342, %v2226
        %v2376 = vsel %vm2361, %v2343, %v2228
        %v2377 = vsel %vm2361, %v2344, %v2230
        %v2378 = vsel %vm2361, %v2345, %v2232
        %v2379 = vsel %vm2361, %v2346, %v2234
        %v2380 = vsel %vm2361, %v2347, %v2236
        %v2381 = vsel %vm2361, %v2348, %v2238
        %v2382 = vsel %vm2361, %v2349, %v2240
        %v2383 = vsel %vm2361, %v2350, %v2242
        %v2384 = vsel %vm2361, %v2351, %v2244
        %v2385 = vsel %vm2361, %v2352, %v2246
        %v2386 = vsel %vm2361, %v2353, %v2248
        %v2387 = vsel %vm2361, %v2354, %v2250
        %v2388 = vsel %vm2361, %v2355, %v2252
        %v2389 = vsel %vm2361, %v2356, %v2254
        %v2390 = vsel %vm2361, %v2357, %v2256
        %v2391 = vsel %vm2361, %v2358, %v2258
        %v2392 = vsel %vm2361, %v2359, %v2260
        %v2393 = vsel %vm2361, %v2360, %v2262
        %vm2394 = vcmask 695296
        %v2395 = vsel %vm2394, %v2362, 0.0
        %v2396 = vsel %vm2394, %v2363, 0.0
        %v2397 = vsel %vm2394, %v2364, 0.0
        %v2398 = vsel %vm2394, %v2365, 0.0
        %v2399 = vsel %vm2394, %v2366, 0.0
        %v2400 = vsel %vm2394, %v2367, 0.0
        %v2401 = vsel %vm2394, %v2368, 0.0
        %v2402 = vsel %vm2394, %v2369, 0.0
        %v2403 = vsel %vm2394, %v2370, 0.0
        %v2404 = vsel %vm2394, %v2371, 0.0
        %v2405 = vsel %vm2394, %v2372, 0.0
        %v2406 = vsel %vm2394, %v2373, 0.0
        %v2407 = vsel %vm2394, %v2374, 0.0
        %v2408 = vsel %vm2394, %v2375, 0.0
        %v2409 = vsel %vm2394, %v2376, 0.0
        %v2410 = vsel %vm2394, %v2377, 0.0
        %v2411 = vsel %vm2394, %v2378, 0.0
        %v2412 = vsel %vm2394, %v2379, 0.0
        %v2413 = vsel %vm2394, %v2380, 0.0
        %v2414 = vsel %vm2394, %v2381, 0.0
        %v2415 = vsel %vm2394, %v2382, 0.0
        %v2416 = vsel %vm2394, %v2383, 0.0
        %v2417 = vsel %vm2394, %v2384, 0.0
        %v2418 = vsel %vm2394, %v2385, 0.0
        %v2419 = vsel %vm2394, %v2386, 0.0
        %v2420 = vsel %vm2394, %v2387, 0.0
        %v2421 = vsel %vm2394, %v2388, 0.0
        %v2422 = vsel %vm2394, %v2389, 0.0
        %v2423 = vsel %vm2394, %v2390, 0.0
        %v2424 = vsel %vm2394, %v2391, 0.0
        %v2425 = vsel %vm2394, %v2392, 0.0
        %v2426 = vsel %vm2394, %v2393, 0.0
        %v2427 = vld [vmem:[%s1] sm:$0xff]
        %v2428 = vld [vmem:[%s1 + $0x8] sm:$0xff]
        %v2429 = vld [vmem:[%s1 + $0x10] sm:$0xff]
        %v2430 = vld [vmem:[%s1 + $0x18] sm:$0xff]
        %v2431 = vld [vmem:[%s1 + $0x20] sm:$0xff]
        %v2432 = vld [vmem:[%s1 + $0x28] sm:$0xff]
        %v2433 = vld [vmem:[%s1 + $0x30] sm:$0xff]
        %v2434 = vld [vmem:[%s1 + $0x38] sm:$0xff]
        %v2435 = vld [vmem:[%s1 + $0x40] sm:$0xff]
        %v2436 = vld [vmem:[%s1 + $0x48] sm:$0xff]
        %v2437 = vld [vmem:[%s1 + $0x50] sm:$0xff]
        %vm2438 = vcmask 719872
        %v2440 = vsel %vm2438, %v2395, 0
        %v2443 = vsel %vm2438, %v2396, 0
        %v2446 = vsel %vm2438, %v2397, 0
        %v2449 = vsel %vm2438, %v2398, 0
        %v2452 = vsel %vm2438, %v2399, 0
        %v2455 = vsel %vm2438, %v2400, 0
        %v2458 = vsel %vm2438, %v2401, 0
        %v2461 = vsel %vm2438, %v2402, 0
        %v2464 = vsel %vm2438, %v2403, 0
        %v2467 = vsel %vm2438, %v2404, 0
        %v2470 = vsel %vm2438, %v2405, 0
        %v2473 = vsel %vm2438, %v2406, 0
        %v2476 = vsel %vm2438, %v2407, 0
        %v2479 = vsel %vm2438, %v2408, 0
        %v2482 = vsel %vm2438, %v2409, 0
        %v2485 = vsel %vm2438, %v2410, 0
        %v2488 = vsel %vm2438, %v2411, 0
        %v2491 = vsel %vm2438, %v2412, 0
        %v2494 = vsel %vm2438, %v2413, 0
        %v2497 = vsel %vm2438, %v2414, 0
        %v2500 = vsel %vm2438, %v2415, 0
        %v2503 = vsel %vm2438, %v2416, 0
        %v2506 = vsel %vm2438, %v2417, 0
        %v2509 = vsel %vm2438, %v2418, 0
        %v2512 = vsel %vm2438, %v2419, 0
        %v2515 = vsel %vm2438, %v2420, 0
        %v2518 = vsel %vm2438, %v2421, 0
        %v2521 = vsel %vm2438, %v2422, 0
        %v2524 = vsel %vm2438, %v2423, 0
        %v2527 = vsel %vm2438, %v2424, 0
        %v2530 = vsel %vm2438, %v2425, 0
        %v2533 = vsel %vm2438, %v2426, 0
        %2535 = vmatprep.subr.mxu0 0.0
        %2536 = vmatpush1.msra.mxu0 0.0
        %2537 = vmatprep.subr.mxu0 0.0
        %2538 = vmatpush1.msra.mxu0 0.0
        %2539 = vmatprep.subr.mxu0 0.0
        %2540 = vmatpush1.msra.mxu0 0.0
        %2541 = vmatprep.subr.mxu0 0.0
        %2542 = vmatpush1.msra.mxu0 0.0
        %2543 = vmatprep.subr.mxu0 0.0
        %2544 = vmatpush1.msra.mxu0 0.0
        %2545 = vmatprep.subr.mxu0 0.0
        %2546 = vmatpush1.msra.mxu0 %v2437
        %2547 = vmatprep.subr.mxu0 0.0
        %2548 = vmatpush1.msra.mxu0 %v2436
        %2549 = vmatprep.subr.mxu0 0.0
        %2550 = vmatpush1.msra.mxu0 %v2435
        %2551 = vmatprep.subr.mxu0 0.0
        %2552 = vmatpush1.msra.mxu0 %v2434
        %2553 = vmatprep.subr.mxu0 0.0
        %2554 = vmatpush1.msra.mxu0 %v2433
        %2555 = vmatprep.subr.mxu0 0.0
        %2556 = vmatpush1.msra.mxu0 %v2432
        %2557 = vmatprep.subr.mxu0 0.0
        %2558 = vmatpush1.msra.mxu0 %v2431
        %2559 = vmatprep.subr.mxu0 0.0
        %2560 = vmatpush1.msra.mxu0 %v2430
        %2561 = vmatprep.subr.mxu0 0.0
        %2562 = vmatpush1.msra.mxu0 %v2429
        %2563 = vmatprep.subr.mxu0 0.0
        %2564 = vmatpush1.msra.mxu0 %v2428
        %2565 = vmatprep.subr.mxu0 0.0
        %2566 = vmatpush1.msra.mxu0 %v2427
        %2567 = vmatprep.subr.mxu0 0.0
        %2568 = vmatpush2.msra.mxu0 0.0
        %2569 = vmatprep.subr.mxu0 0.0
        %2570 = vmatpush2.msra.mxu0 0.0
        %2571 = vmatprep.subr.mxu0 0.0
        %2572 = vmatpush2.msra.mxu0 0.0
        %2573 = vmatprep.subr.mxu0 0.0
        %2574 = vmatpush2.msra.mxu0 0.0
        %2575 = vmatprep.subr.mxu0 0.0
        %2576 = vmatpush2.msra.mxu0 0.0
        %2577 = vmatprep.subr.mxu0 0.0
        %2578 = vmatpush2.msra.mxu0 0.0
        %2579 = vmatprep.subr.mxu0 0.0
        %2580 = vmatpush2.msra.mxu0 0.0
        %2581 = vmatprep.subr.mxu0 0.0
        %2582 = vmatpush2.msra.mxu0 0.0
        %2583 = vmatprep.subr.mxu0 0.0
        %2584 = vmatpush2.msra.mxu0 0.0
        %2585 = vmatprep.subr.mxu0 0.0
        %2586 = vmatpush2.msra.mxu0 0.0
        %2587 = vmatprep.subr.mxu0 0.0
        %2588 = vmatpush2.msra.mxu0 0.0
        %2589 = vmatprep.subr.mxu0 0.0
        %2590 = vmatpush2.msra.mxu0 0.0
        %2591 = vmatprep.subr.mxu0 0.0
        %2592 = vmatpush2.msra.mxu0 0.0
        %2593 = vmatprep.subr.mxu0 0.0
        %2594 = vmatpush2.msra.mxu0 0.0
        %2595 = vmatprep.subr.mxu0 0.0
        %2596 = vmatpush2.msra.mxu0 0.0
        %2597 = vmatprep.subr.mxu0 0.0
        %2598 = vmatpush2.msra.mxu0 0.0
        %2599 = vmatprep.mubr.f32.mxu0 0.0
        %2600 = vmatmul.mubr.f32.gmra.mxu0 %v2440
        %v2601 = vpop.f32.mrf.mxu0
        %v2602 = vadd.f32 0.0, %v2601
        %v2603 = vpop.f32.mrf.mxu0
        %2604 = vmatprep.mubr.f32.mxu0 0.0
        %2605 = vmatmul.mubr.f32.gmra.mxu0 %v2443
        %v2606 = vpop.f32.mrf.mxu0
        %v2607 = vadd.f32 0.0, %v2606
        %v2608 = vpop.f32.mrf.mxu0
        %2609 = vmatprep.mubr.f32.mxu0 0.0
        %2610 = vmatmul.mubr.f32.gmra.mxu0 %v2446
        %v2611 = vpop.f32.mrf.mxu0
        %v2612 = vadd.f32 0.0, %v2611
        %v2613 = vpop.f32.mrf.mxu0
        %2614 = vmatprep.mubr.f32.mxu0 0.0
        %2615 = vmatmul.mubr.f32.gmra.mxu0 %v2449
        %v2616 = vpop.f32.mrf.mxu0
        %v2617 = vadd.f32 0.0, %v2616
        %v2618 = vpop.f32.mrf.mxu0
        %2619 = vmatprep.mubr.f32.mxu0 0.0
        %2620 = vmatmul.mubr.f32.gmra.mxu0 %v2452
        %v2621 = vpop.f32.mrf.mxu0
        %v2622 = vadd.f32 0.0, %v2621
        %v2623 = vpop.f32.mrf.mxu0
        %2624 = vmatprep.mubr.f32.mxu0 0.0
        %2625 = vmatmul.mubr.f32.gmra.mxu0 %v2455
        %v2626 = vpop.f32.mrf.mxu0
        %v2627 = vadd.f32 0.0, %v2626
        %v2628 = vpop.f32.mrf.mxu0
        %2629 = vmatprep.mubr.f32.mxu0 0.0
        %2630 = vmatmul.mubr.f32.gmra.mxu0 %v2458
        %v2631 = vpop.f32.mrf.mxu0
        %v2632 = vadd.f32 0.0, %v2631
        %v2633 = vpop.f32.mrf.mxu0
        %2634 = vmatprep.mubr.f32.mxu0 0.0
        %2635 = vmatmul.mubr.f32.gmra.mxu0 %v2461
        %v2636 = vpop.f32.mrf.mxu0
        %v2637 = vadd.f32 0.0, %v2636
        %v2638 = vpop.f32.mrf.mxu0
        %2639 = vmatprep.mubr.f32.mxu0 0.0
        %2640 = vmatmul.mubr.f32.gmra.mxu0 %v2464
        %v2641 = vpop.f32.mrf.mxu0
        %v2642 = vadd.f32 0.0, %v2641
        %v2643 = vpop.f32.mrf.mxu0
        %2644 = vmatprep.mubr.f32.mxu0 0.0
        %2645 = vmatmul.mubr.f32.gmra.mxu0 %v2467
        %v2646 = vpop.f32.mrf.mxu0
        %v2647 = vadd.f32 0.0, %v2646
        %v2648 = vpop.f32.mrf.mxu0
        %2649 = vmatprep.mubr.f32.mxu0 0.0
        %2650 = vmatmul.mubr.f32.gmra.mxu0 %v2470
        %v2651 = vpop.f32.mrf.mxu0
        %v2652 = vadd.f32 0.0, %v2651
        %v2653 = vpop.f32.mrf.mxu0
        %2654 = vmatprep.mubr.f32.mxu0 0.0
        %2655 = vmatmul.mubr.f32.gmra.mxu0 %v2473
        %v2656 = vpop.f32.mrf.mxu0
        %v2657 = vadd.f32 0.0, %v2656
        %v2658 = vpop.f32.mrf.mxu0
        %2659 = vmatprep.mubr.f32.mxu0 0.0
        %2660 = vmatmul.mubr.f32.gmra.mxu0 %v2476
        %v2661 = vpop.f32.mrf.mxu0
        %v2662 = vadd.f32 0.0, %v2661
        %v2663 = vpop.f32.mrf.mxu0
        %2664 = vmatprep.mubr.f32.mxu0 0.0
        %2665 = vmatmul.mubr.f32.gmra.mxu0 %v2479
        %v2666 = vpop.f32.mrf.mxu0
        %v2667 = vadd.f32 0.0, %v2666
        %v2668 = vpop.f32.mrf.mxu0
        %2669 = vmatprep.mubr.f32.mxu0 0.0
        %2670 = vmatmul.mubr.f32.gmra.mxu0 %v2482
        %v2671 = vpop.f32.mrf.mxu0
        %v2672 = vadd.f32 0.0, %v2671
        %v2673 = vpop.f32.mrf.mxu0
        %2674 = vmatprep.mubr.f32.mxu0 0.0
        %2675 = vmatmul.mubr.f32.gmra.mxu0 %v2485
        %v2676 = vpop.f32.mrf.mxu0
        %v2677 = vadd.f32 0.0, %v2676
        %v2678 = vpop.f32.mrf.mxu0
        %2679 = vmatprep.mubr.f32.mxu0 0.0
        %2680 = vmatmul.mubr.f32.gmra.mxu0 %v2488
        %v2681 = vpop.f32.mrf.mxu0
        %v2682 = vadd.f32 0.0, %v2681
        %v2683 = vpop.f32.mrf.mxu0
        %2684 = vmatprep.mubr.f32.mxu0 0.0
        %2685 = vmatmul.mubr.f32.gmra.mxu0 %v2491
        %v2686 = vpop.f32.mrf.mxu0
        %v2687 = vadd.f32 0.0, %v2686
        %v2688 = vpop.f32.mrf.mxu0
        %2689 = vmatprep.mubr.f32.mxu0 0.0
        %2690 = vmatmul.mubr.f32.gmra.mxu0 %v2494
        %v2691 = vpop.f32.mrf.mxu0
        %v2692 = vadd.f32 0.0, %v2691
        %v2693 = vpop.f32.mrf.mxu0
        %2694 = vmatprep.mubr.f32.mxu0 0.0
        %2695 = vmatmul.mubr.f32.gmra.mxu0 %v2497
        %v2696 = vpop.f32.mrf.mxu0
        %v2697 = vadd.f32 0.0, %v2696
        %v2698 = vpop.f32.mrf.mxu0
        %2699 = vmatprep.mubr.f32.mxu0 0.0
        %2700 = vmatmul.mubr.f32.gmra.mxu0 %v2500
        %v2701 = vpop.f32.mrf.mxu0
        %v2702 = vadd.f32 0.0, %v2701
        %v2703 = vpop.f32.mrf.mxu0
        %2704 = vmatprep.mubr.f32.mxu0 0.0
        %2705 = vmatmul.mubr.f32.gmra.mxu0 %v2503
        %v2706 = vpop.f32.mrf.mxu0
        %v2707 = vadd.f32 0.0, %v2706
        %v2708 = vpop.f32.mrf.mxu0
        %2709 = vmatprep.mubr.f32.mxu0 0.0
        %2710 = vmatmul.mubr.f32.gmra.mxu0 %v2506
        %v2711 = vpop.f32.mrf.mxu0
        %v2712 = vadd.f32 0.0, %v2711
        %v2713 = vpop.f32.mrf.mxu0
        %2714 = vmatprep.mubr.f32.mxu0 0.0
        %2715 = vmatmul.mubr.f32.gmra.mxu0 %v2509
        %v2716 = vpop.f32.mrf.mxu0
        %v2717 = vadd.f32 0.0, %v2716
        %v2718 = vpop.f32.mrf.mxu0
        %2719 = vmatprep.mubr.f32.mxu0 0.0
        %2720 = vmatmul.mubr.f32.gmra.mxu0 %v2512
        %v2721 = vpop.f32.mrf.mxu0
        %v2722 = vadd.f32 0.0, %v2721
        %v2723 = vpop.f32.mrf.mxu0
        %2724 = vmatprep.mubr.f32.mxu0 0.0
        %2725 = vmatmul.mubr.f32.gmra.mxu0 %v2515
        %v2726 = vpop.f32.mrf.mxu0
        %v2727 = vadd.f32 0.0, %v2726
        %v2728 = vpop.f32.mrf.mxu0
        %2729 = vmatprep.mubr.f32.mxu0 0.0
        %2730 = vmatmul.mubr.f32.gmra.mxu0 %v2518
        %v2731 = vpop.f32.mrf.mxu0
        %v2732 = vadd.f32 0.0, %v2731
        %v2733 = vpop.f32.mrf.mxu0
        %2734 = vmatprep.mubr.f32.mxu0 0.0
        %2735 = vmatmul.mubr.f32.gmra.mxu0 %v2521
        %v2736 = vpop.f32.mrf.mxu0
        %v2737 = vadd.f32 0.0, %v2736
        %v2738 = vpop.f32.mrf.mxu0
        %2739 = vmatprep.mubr.f32.mxu0 0.0
        %2740 = vmatmul.mubr.f32.gmra.mxu0 %v2524
        %v2741 = vpop.f32.mrf.mxu0
        %v2742 = vadd.f32 0.0, %v2741
        %v2743 = vpop.f32.mrf.mxu0
        %2744 = vmatprep.mubr.f32.mxu0 0.0
        %2745 = vmatmul.mubr.f32.gmra.mxu0 %v2527
        %v2746 = vpop.f32.mrf.mxu0
        %v2747 = vadd.f32 0.0, %v2746
        %v2748 = vpop.f32.mrf.mxu0
        %2749 = vmatprep.mubr.f32.mxu0 0.0
        %2750 = vmatmul.mubr.f32.gmra.mxu0 %v2530
        %v2751 = vpop.f32.mrf.mxu0
        %v2752 = vadd.f32 0.0, %v2751
        %v2753 = vpop.f32.mrf.mxu0
        %2754 = vmatprep.mubr.f32.mxu0 0.0
        %2755 = vmatmul.mubr.f32.gmra.mxu0 %v2533
        %v2756 = vpop.f32.mrf.mxu0
        %v2757 = vadd.f32 0.0, %v2756
        %v2758 = vpop.f32.mrf.mxu0
        %2759 = vdwg.mxu0
        %2760 = vst [vmem:[%s137] sm:$0xff] %v2602
        %2761 = vst [vmem:[%s137 + $0x8] sm:$0xff] %v2607
        %2762 = vst [vmem:[%s137 + $0x10] sm:$0xff] %v2612
        %2763 = vst [vmem:[%s137 + $0x18] sm:$0xff] %v2617
        %2764 = vst [vmem:[%s137 + $0x20] sm:$0xff] %v2622
        %2765 = vst [vmem:[%s137 + $0x28] sm:$0xff] %v2627
        %2766 = vst [vmem:[%s137 + $0x30] sm:$0xff] %v2632
        %2767 = vst [vmem:[%s137 + $0x38] sm:$0xff] %v2637
        %2768 = vst [vmem:[%s137 + $0x40] sm:$0xff] %v2642
        %2769 = vst [vmem:[%s137 + $0x48] sm:$0xff] %v2647
        %2770 = vst [vmem:[%s137 + $0x50] sm:$0xff] %v2652
        %2771 = vst [vmem:[%s137 + $0x58] sm:$0xff] %v2657
        %2772 = vst [vmem:[%s137 + $0x60] sm:$0xff] %v2662
        %2773 = vst [vmem:[%s137 + $0x68] sm:$0xff] %v2667
        %2774 = vst [vmem:[%s137 + $0x70] sm:$0xff] %v2672
        %2775 = vst [vmem:[%s137 + $0x78] sm:$0xff] %v2677
        %2776 = vst [vmem:[%s137 + $0x80] sm:$0xff] %v2682
        %2777 = vst [vmem:[%s137 + $0x88] sm:$0xff] %v2687
        %2778 = vst [vmem:[%s137 + $0x90] sm:$0xff] %v2692
        %2779 = vst [vmem:[%s137 + $0x98] sm:$0xff] %v2697
        %2780 = vst [vmem:[%s137 + $0xa0] sm:$0xff] %v2702
        %2781 = vst [vmem:[%s137 + $0xa8] sm:$0xff] %v2707
        %2782 = vst [vmem:[%s137 + $0xb0] sm:$0xff] %v2712
        %2783 = vst [vmem:[%s137 + $0xb8] sm:$0xff] %v2717
        %2784 = vst [vmem:[%s137 + $0xc0] sm:$0xff] %v2722
        %2785 = vst [vmem:[%s137 + $0xc8] sm:$0xff] %v2727
        %2786 = vst [vmem:[%s137 + $0xd0] sm:$0xff] %v2732
        %2787 = vst [vmem:[%s137 + $0xd8] sm:$0xff] %v2737
        %2788 = vst [vmem:[%s137 + $0xe0] sm:$0xff] %v2742
        %2789 = vst [vmem:[%s137 + $0xe8] sm:$0xff] %v2747
        %2790 = vst [vmem:[%s137 + $0xf0] sm:$0xff] %v2752
        %2791 = vst [vmem:[%s137 + $0xf8] sm:$0xff] %v2757
        %s2792 = sand.u32 %s71, 1
        %s2793 = scalar_lea.sflag [#allocation3], %s2792
        %s2794 = sand.u32 %s71, 1
        %s2795 = smul.addr %s2794, 256
        %s2796 = scalar_lea.vmem [#allocation2], %s2795
        // Predicated region
        $region29: #{tpu_custom_call.1} parent=27 // pred_check
          %p2797 = pneg %p81
        $region30: #{tpu_custom_call.1} parent=27 // pred_check_branch
          %2799 = sbr.rel (%p2797) target = $region32
        $region31: #{tpu_custom_call.1} parent=27 // pred_region
          %s2800 = smul.u32 32, %s16
          %s2802 = ssub.s32 4096, 4096
          %2803 = vsyncadd %s2793, %s2802
          %s2804 = smul.addr %s2800, 128
          %s2805 = scalar_lea.hbm %s2, %s2804
          %s2806 = sshll.u32 %s2796, 4
          %s2807 = int_to_ptr.vmem [resolvable:$true] %s2806
          %2812 = dma.vmem_to_hbm [thread:$0]  %s2807, 4096, %s2805, %s2793, 128, 128, 8
        $region32: #{tpu_custom_call.1} parent=27 // pred_fallthru
          _
      $region28: #{tpu_custom_call.1} parent=5 // pred_fallthru
        _
      %p2813 = scmp.le.s32.totalorder 2, %s11
      // Predicated region
      $region33: #{tpu_custom_call.1} parent=5 // pred_check
        %p2814 = pneg %p2813
      $region34: #{tpu_custom_call.1} parent=5 // pred_check_branch
        %2816 = sbr.rel (%p2814) target = $region36
      $region35: #{tpu_custom_call.1} parent=5 // pred_region
        %s2817 = ssub.s32 %s11, 2
        // Predicated region
        $region37: #{tpu_custom_call.1} parent=35 // pred_check
          %p2818 = pneg %p87
        $region38: #{tpu_custom_call.1} parent=35 // pred_check_branch
          %2820 = sbr.rel (%p2818) target = $region40
        $region39: #{tpu_custom_call.1} parent=35 // pred_region
          %s2821 = sand.u32 %s72, 1
          %s2822 = scalar_lea.sflag [#allocation3], %s2821
          %s2823 = sand.u32 %s72, 1
          %s2824 = smul.addr %s2823, 256
          %s2825 = scalar_lea.vmem [#allocation2], %s2824
          %2826 = dma.done %s2822, 4096
        $region40: #{tpu_custom_call.1} parent=35 // pred_fallthru
          _
      $region36: #{tpu_custom_call.1} parent=5 // pred_fallthru
        _
    $region6: #{tpu_custom_call.1} parent=1 // loop_footer
      %s15 = sadd.s32 1, %s11
    $region7: #{tpu_custom_call.1} parent=1 // loop_footer_branch
      %10 = sbr.rel target = $region3
    $region8: #{tpu_custom_call.1} parent=1 // loop_exit
      _
    %2827 = vsyncpa [#allocation3], 1
    %s2828 = scalar_lea.sflag [#allocation3], 1
    %2829 = vsyncpa %s2828, 1

</llo_original>
